<compile_context>
chip_gen: v6e
topology: v6e:2x2x1
jax: 0.10.0
libtpu: 0.0.40
codegen_flags: <defaults>
</compile_context>

<pallas_src>
import math

import jax
import jax.numpy as jnp
from jax import lax
from jax.experimental import pallas as pl
from jax.experimental.pallas import tpu as pltpu


def _gelu_exact(x):
    # torch nn.GELU default = exact erf formulation
    return 0.5 * x * (1.0 + lax.erf(x * (1.0 / math.sqrt(2.0))))


def _layernorm(x, w, b, eps=1e-5):
    mu = jnp.mean(x, axis=-1, keepdims=True)
    var = jnp.mean((x - mu) ** 2, axis=-1, keepdims=True)
    return (x - mu) * lax.rsqrt(var + eps) * w + b


def make_ceblock_kernel(num_heads: int, emit_attn: bool):
    def kernel(*refs):
        (x_ref,
         ln1_w_ref, ln1_b_ref,
         qkv_w_ref,
         proj_w_ref, proj_b_ref,
         ln2_w_ref, ln2_b_ref,
         fc1_w_ref, fc1_b_ref,
         fc2_w_ref, fc2_b_ref) = refs[:12]
        if emit_attn:
            x_out_ref, attn_out_ref, attn_v_scr = refs[12:]
        else:
            x_out_ref, attn_v_scr = refs[12:]
            attn_out_ref = None

        x = x_ref[0]                        # (N, C) float32
        N, C = x.shape
        hd = C // num_heads
        scale = hd ** (-0.5)

        # ---- norm1 + qkv projection (bf16 operands, f32 accumulation on MXU) ----
        xn = _layernorm(x, ln1_w_ref[0], ln1_b_ref[0]).astype(jnp.bfloat16)
        qkv = jnp.dot(xn, qkv_w_ref[...],
                      preferred_element_type=jnp.float32)              # (N, 3C) f32

        # fold the softmax scale into q once (N*C mults instead of H*N*N)
        q = (qkv[:, 0 * C:1 * C] * scale).astype(jnp.bfloat16)
        k = qkv[:, 1 * C:2 * C].astype(jnp.bfloat16)
        v = qkv[:, 2 * C:3 * C].astype(jnp.bfloat16)

        # ---- per-head attention; head outputs go into a VMEM scratch slab ----
        for h in range(num_heads):
            qh = q[:, h * hd:(h + 1) * hd]
            kh = k[:, h * hd:(h + 1) * hd]
            vh = v[:, h * hd:(h + 1) * hd]
            # q @ k^T without materializing a transpose
            s = lax.dot_general(qh, kh, (((1,), (1,)), ((), ())),
                                preferred_element_type=jnp.float32)    # (N, N)
            m = jnp.max(s, axis=-1, keepdims=True)
            e = jnp.exp(s - m)
            inv = pl.reciprocal(jnp.sum(e, axis=-1, keepdims=True), approx=True)
            p = e * inv
            if emit_attn:
                attn_out_ref[0, h] = p
            attn_v_scr[:, h * hd:(h + 1) * hd] = jnp.dot(
                p.astype(jnp.bfloat16), vh, preferred_element_type=jnp.float32)

        # ---- output projection + first residual ----
        x_attn = jnp.dot(attn_v_scr[...].astype(jnp.bfloat16), proj_w_ref[...],
                         preferred_element_type=jnp.float32) + proj_b_ref[0]
        x1 = x + x_attn

        # ---- norm2 + MLP (fc1 -> exact GELU -> fc2) + second residual ----
        x2n = _layernorm(x1, ln2_w_ref[0], ln2_b_ref[0]).astype(jnp.bfloat16)
        h1 = jnp.dot(x2n, fc1_w_ref[...],
                     preferred_element_type=jnp.float32) + fc1_b_ref[0]
        h1 = _gelu_exact(h1).astype(jnp.bfloat16)
        h2 = jnp.dot(h1, fc2_w_ref[...],
                     preferred_element_type=jnp.float32) + fc2_b_ref[0]

        x_out_ref[0] = x1 + h2

    return kernel


def ce_block_forward(x, global_index_template, global_index_search, params,
                     num_heads, return_attn=True):
    """Pallas CEBlock forward. Returns (x, gi_t, gi_s, removed_index, attn).

    return_attn=False skips the (B, H, N, N) attention-weights output entirely
    (it is never consumed in the default keep_ratio_search==1.0 path) and
    removes the dominant HBM writeback traffic.
    """
    B, N, C = x.shape
    H = num_heads
    hidden = params["fc1_w"].shape[1]

    # Cast GEMM weight matrices to bf16 once on the host: halves HBM traffic and
    # resident weight VMEM; MXU accumulates in f32. Biases / LN params stay f32.
    qkv_w = params["qkv_w"].astype(jnp.bfloat16)
    proj_w = params["proj_w"].astype(jnp.bfloat16)
    fc1_w = params["fc1_w"].astype(jnp.bfloat16)
    fc2_w = params["fc2_w"].astype(jnp.bfloat16)

    kernel = make_ceblock_kernel(H, return_attn)

    full2 = lambda shape: pl.BlockSpec(shape, lambda b: (0, 0))

    out_shape = [jax.ShapeDtypeStruct((B, N, C), jnp.float32)]
    out_specs = [pl.BlockSpec((1, N, C), lambda b: (b, 0, 0))]
    if return_attn:
        out_shape.append(jax.ShapeDtypeStruct((B, H, N, N), jnp.float32))
        out_specs.append(pl.BlockSpec((1, H, N, N), lambda b: (b, 0, 0, 0)))

    outs = pl.pallas_call(
        kernel,
        out_shape=tuple(out_shape),
        grid=(B,),
        in_specs=[
            pl.BlockSpec((1, N, C), lambda b: (b, 0, 0)),       # x
            full2((1, C)), full2((1, C)),                       # ln1 w, b
            full2((C, 3 * C)),                                  # qkv weight (in,out) bf16
            full2((C, C)), full2((1, C)),                       # proj w (bf16), b (f32)
            full2((1, C)), full2((1, C)),                       # ln2 w, b
            full2((C, hidden)), full2((1, hidden)),             # fc1 w (bf16), b
            full2((hidden, C)), full2((1, C)),                  # fc2 w (bf16), b
        ],
        out_specs=tuple(out_specs),
        scratch_shapes=[pltpu.VMEM((N, C), jnp.float32)],       # per-head attn@v slab
        compiler_params=pltpu.CompilerParams(
            dimension_semantics=("parallel",),
            vmem_limit_bytes=64 * 1024 * 1024),
    )(
        x,
        params["ln1_w"], params["ln1_b"],
        qkv_w,
        proj_w, params["proj_b"],
        params["ln2_w"], params["ln2_b"],
        fc1_w, params["fc1_b"],
        fc2_w, params["fc2_b"],
    )

    if return_attn:
        x_out, attn = outs
    else:
        x_out = outs[0] if isinstance(outs, (tuple, list)) else outs
        attn = None

    # keep_ratio_search == 1.0 -> candidate_elimination skipped
    removed_index_search = None
    return x_out, global_index_template, global_index_search, removed_index_search, attn


def ce_block_reference(x, params, num_heads):
    """Pure-JAX f32 reference mirroring the PyTorch forward (for verification)."""
    B, N, C = x.shape
    H = num_heads
    hd = C // H
    scale = hd ** (-0.5)

    def ln(v, w, b):
        mu = v.mean(-1, keepdims=True)
        var = ((v - mu) ** 2).mean(-1, keepdims=True)
        return (v - mu) / jnp.sqrt(var + 1e-5) * w[0] + b[0]

    xn = ln(x, params["ln1_w"], params["ln1_b"])
    qkv = xn @ params["qkv_w"]                              # (B, N, 3C)
    qkv = qkv.reshape(B, N, 3, H, hd).transpose(2, 0, 3, 1, 4)
    q, k, v = qkv[0], qkv[1], qkv[2]                        # (B, H, N, hd)
    s = jnp.einsum("bhqd,bhkd->bhqk", q, k) * scale
    attn = jax.nn.softmax(s, axis=-1)
    av = jnp.einsum("bhqk,bhkd->bhqd", attn, v).transpose(0, 2, 1, 3).reshape(B, N, C)
    x_attn = av @ params["proj_w"] + params["proj_b"][0]
    x1 = x + x_attn
    x2n = ln(x1, params["ln2_w"], params["ln2_b"])
    h1 = jax.nn.gelu(x2n @ params["fc1_w"] + params["fc1_b"][0], approximate=False)
    h2 = h1 @ params["fc2_w"] + params["fc2_b"][0]
    return x1 + h2, attn


def make_params(key, dim, num_heads, mlp_ratio=4.0):
    hidden = int(dim * mlp_ratio)
    ks = jax.random.split(key, 8)
    init = lambda k, shape, fan_in: (jax.random.normal(k, shape, jnp.float32)
                                     / math.sqrt(fan_in))
    return {
        "ln1_w": jnp.ones((1, dim), jnp.float32),
        "ln1_b": jnp.zeros((1, dim), jnp.float32),
        "qkv_w": init(ks[0], (dim, 3 * dim), dim),          # (in, out), no bias
        "proj_w": init(ks[1], (dim, dim), dim),
        "proj_b": init(ks[2], (1, dim), dim),
        "ln2_w": jnp.ones((1, dim), jnp.float32),
        "ln2_b": jnp.zeros((1, dim), jnp.float32),
        "fc1_w": init(ks[3], (dim, hidden), dim),
        "fc1_b": init(ks[4], (1, hidden), dim),
        "fc2_w": init(ks[5], (hidden, dim), hidden),
        "fc2_b": init(ks[6], (1, dim), hidden),
    }


if __name__ == "__main__":
    B, dim, num_heads = 2, 32, 4
    lens_t, lens_s = 4, 12
    N = lens_t + lens_s

    key = jax.random.PRNGKey(0)
    kx, kp = jax.random.split(key)
    x = jax.random.normal(kx, (B, N, dim), jnp.float32)
    global_index_template = jnp.tile(jnp.arange(lens_t, dtype=jnp.int32)[None], (B, 1))
    global_index_search = jnp.tile(jnp.arange(lens_s, dtype=jnp.int32)[None], (B, 1))
    params = make_params(kp, dim, num_heads)

    # full path (emits attention weights, as the PyTorch forward does)
    x_out, gi_t, gi_s, removed, attn = ce_block_forward(
        x, global_index_template, global_index_search, params, num_heads,
        return_attn=True)
    jax.block_until_ready((x_out, attn))

    # fast path: attn output dropped (dead in default keep_ratio_search==1.0 path)
    x_out2, _, _, _, attn2 = ce_block_forward(
        x, global_index_template, global_index_search, params, num_heads,
        return_attn=False)
    jax.block_until_ready(x_out2)

    # verify against pure-JAX f32 reference (tolerances loosened for bf16 GEMMs
    # + EUP approximate reciprocal in the kernel's softmax)
    x_ref, attn_ref = ce_block_reference(x, params, num_heads)
    assert jnp.allclose(x_out, x_ref, rtol=5e-2, atol=5e-2), "x mismatch"
    assert jnp.allclose(attn, attn_ref, rtol=2e-2, atol=2e-2), "attn mismatch"
    assert jnp.allclose(x_out2, x_out, rtol=1e-5, atol=1e-5), "return_attn=False x mismatch"
    assert attn2 is None
    assert removed is None

    print("KERNEL_OK")
</pallas_src>

<mosaic_0001>
module attributes {stable_mosaic.version = 11 : i64} {
  func.func @kernel(%arg0: i32, %arg1: memref<1x16x32xf32, #tpu.memory_space<vmem>>, %arg2: memref<1x32xf32, #tpu.memory_space<vmem>>, %arg3: memref<1x32xf32, #tpu.memory_space<vmem>>, %arg4: memref<32x96xbf16, #tpu.memory_space<vmem>>, %arg5: memref<32x32xbf16, #tpu.memory_space<vmem>>, %arg6: memref<1x32xf32, #tpu.memory_space<vmem>>, %arg7: memref<1x32xf32, #tpu.memory_space<vmem>>, %arg8: memref<1x32xf32, #tpu.memory_space<vmem>>, %arg9: memref<32x128xbf16, #tpu.memory_space<vmem>>, %arg10: memref<1x128xf32, #tpu.memory_space<vmem>>, %arg11: memref<128x32xbf16, #tpu.memory_space<vmem>>, %arg12: memref<1x32xf32, #tpu.memory_space<vmem>>, %arg13: memref<1x16x32xf32, #tpu.memory_space<vmem>>, %arg14: memref<1x4x16x16xf32, #tpu.memory_space<vmem>>, %arg15: memref<16x32xf32, #tpu.memory_space<vmem>>) attributes {dimension_semantics = [#tpu.dimension_semantics<parallel>], iteration_bounds = array<i64: 2>, scalar_prefetch = 0 : i64, scratch_operands = 1 : i64, tpu.core_type = #tpu.core_type<tc>, window_params = [{transform_indices = @transform_0, window_bounds = array<i64: 1, 16, 32>}, {pipeline_mode = #tpu.pipeline_mode<synchronous>, transform_indices = @transform_1, window_bounds = array<i64: 1, 32>}, {pipeline_mode = #tpu.pipeline_mode<synchronous>, transform_indices = @transform_2, window_bounds = array<i64: 1, 32>}, {pipeline_mode = #tpu.pipeline_mode<synchronous>, transform_indices = @transform_3, window_bounds = array<i64: 32, 96>}, {pipeline_mode = #tpu.pipeline_mode<synchronous>, transform_indices = @transform_4, window_bounds = array<i64: 32, 32>}, {pipeline_mode = #tpu.pipeline_mode<synchronous>, transform_indices = @transform_5, window_bounds = array<i64: 1, 32>}, {pipeline_mode = #tpu.pipeline_mode<synchronous>, transform_indices = @transform_6, window_bounds = array<i64: 1, 32>}, {pipeline_mode = #tpu.pipeline_mode<synchronous>, transform_indices = @transform_7, window_bounds = array<i64: 1, 32>}, {pipeline_mode = #tpu.pipeline_mode<synchronous>, transform_indices = @transform_8, window_bounds = array<i64: 32, 128>}, {pipeline_mode = #tpu.pipeline_mode<synchronous>, transform_indices = @transform_9, window_bounds = array<i64: 1, 128>}, {pipeline_mode = #tpu.pipeline_mode<synchronous>, transform_indices = @transform_10, window_bounds = array<i64: 128, 32>}, {pipeline_mode = #tpu.pipeline_mode<synchronous>, transform_indices = @transform_11, window_bounds = array<i64: 1, 32>}, {transform_indices = @transform_12, window_bounds = array<i64: 1, 16, 32>}, {transform_indices = @transform_13, window_bounds = array<i64: 1, 4, 16, 16>}]} {
    %c0 = arith.constant 0 : index
    %c0_0 = arith.constant 0 : index
    %c0_1 = arith.constant 0 : index
    %0 = vector.load %arg1[%c0, %c0_0, %c0_1] : memref<1x16x32xf32, #tpu.memory_space<vmem>>, vector<1x16x32xf32>
    %1 = vector.shape_cast %0 : vector<1x16x32xf32> to vector<16x32xf32>
    %c0_2 = arith.constant 0 : index
    %c0_3 = arith.constant 0 : index
    %2 = vector.load %arg2[%c0_2, %c0_3] : memref<1x32xf32, #tpu.memory_space<vmem>>, vector<1x32xf32>
    %3 = vector.shape_cast %2 : vector<1x32xf32> to vector<32xf32>
    %c0_4 = arith.constant 0 : index
    %c0_5 = arith.constant 0 : index
    %4 = vector.load %arg3[%c0_4, %c0_5] : memref<1x32xf32, #tpu.memory_space<vmem>>, vector<1x32xf32>
    %5 = vector.shape_cast %4 : vector<1x32xf32> to vector<32xf32>
    %cst = arith.constant dense<0.000000e+00> : vector<16xf32>
    %6 = vector.multi_reduction <add>, %1, %cst [1] : vector<16x32xf32> to vector<16xf32>
    %7 = vector.shape_cast %6 : vector<16xf32> to vector<16x1xf32>
    %cst_6 = arith.constant 3.200000e+01 : f32
    %8 = vector.broadcast %cst_6 : f32 to vector<16x1xf32>
    %9 = arith.divf %7, %8 : vector<16x1xf32>
    %10 = vector.broadcast %9 : vector<16x1xf32> to vector<16x32xf32>
    %11 = arith.subf %1, %10 : vector<16x32xf32>
    %12 = arith.mulf %11, %11 : vector<16x32xf32>
    %cst_7 = arith.constant dense<0.000000e+00> : vector<16xf32>
    %13 = vector.multi_reduction <add>, %12, %cst_7 [1] : vector<16x32xf32> to vector<16xf32>
    %14 = vector.shape_cast %13 : vector<16xf32> to vector<16x1xf32>
    %cst_8 = arith.constant 3.200000e+01 : f32
    %15 = vector.broadcast %cst_8 : f32 to vector<16x1xf32>
    %16 = arith.divf %14, %15 : vector<16x1xf32>
    %17 = vector.broadcast %9 : vector<16x1xf32> to vector<16x32xf32>
    %18 = arith.subf %1, %17 : vector<16x32xf32>
    %cst_9 = arith.constant 9.99999974E-6 : f32
    %19 = vector.broadcast %cst_9 : f32 to vector<16x1xf32>
    %20 = arith.addf %16, %19 : vector<16x1xf32>
    %21 = math.rsqrt %20 : vector<16x1xf32>
    %22 = vector.broadcast %21 : vector<16x1xf32> to vector<16x32xf32>
    %23 = arith.mulf %18, %22 : vector<16x32xf32>
    %24 = vector.shape_cast %3 : vector<32xf32> to vector<1x32xf32>
    %25 = vector.broadcast %24 : vector<1x32xf32> to vector<16x32xf32>
    %26 = arith.mulf %23, %25 : vector<16x32xf32>
    %27 = vector.shape_cast %5 : vector<32xf32> to vector<1x32xf32>
    %28 = vector.broadcast %27 : vector<1x32xf32> to vector<16x32xf32>
    %29 = arith.addf %26, %28 : vector<16x32xf32>
    %30 = arith.truncf %29 : vector<16x32xf32> to vector<16x32xbf16>
    %c0_10 = arith.constant 0 : index
    %c0_11 = arith.constant 0 : index
    %31 = vector.load %arg4[%c0_10, %c0_11] : memref<32x96xbf16, #tpu.memory_space<vmem>>, vector<32x96xbf16>
    %cst_12 = arith.constant dense<0.000000e+00> : vector<16x96xf32>
    %32 = tpu.matmul %30, %31, %cst_12 {dimension_numbers = #tpu.dot_dimension_numbers<[1], [0], [0], [1], [0, 0, 1, 1], [], []>} : vector<16x32xbf16>, vector<32x96xbf16>, vector<16x96xf32> -> vector<16x96xf32>
    %33 = vector.extract_strided_slice %32 {offsets = [0, 0], sizes = [16, 32], strides = [1, 1]} : vector<16x96xf32> to vector<16x32xf32>
    %cst_13 = arith.constant 0.353553385 : f32
    %34 = vector.broadcast %cst_13 : f32 to vector<16x32xf32>
    %35 = arith.mulf %33, %34 : vector<16x32xf32>
    %36 = arith.truncf %35 : vector<16x32xf32> to vector<16x32xbf16>
    %37 = vector.extract_strided_slice %32 {offsets = [0, 32], sizes = [16, 32], strides = [1, 1]} : vector<16x96xf32> to vector<16x32xf32>
    %38 = arith.truncf %37 : vector<16x32xf32> to vector<16x32xbf16>
    %39 = vector.extract_strided_slice %32 {offsets = [0, 64], sizes = [16, 32], strides = [1, 1]} : vector<16x96xf32> to vector<16x32xf32>
    %40 = arith.truncf %39 : vector<16x32xf32> to vector<16x32xbf16>
    %41 = vector.extract_strided_slice %36 {offsets = [0, 0], sizes = [16, 8], strides = [1, 1]} : vector<16x32xbf16> to vector<16x8xbf16>
    %42 = vector.extract_strided_slice %38 {offsets = [0, 0], sizes = [16, 8], strides = [1, 1]} : vector<16x32xbf16> to vector<16x8xbf16>
    %43 = vector.extract_strided_slice %40 {offsets = [0, 0], sizes = [16, 8], strides = [1, 1]} : vector<16x32xbf16> to vector<16x8xbf16>
    %cst_14 = arith.constant dense<0.000000e+00> : vector<16x16xf32>
    %44 = tpu.matmul %41, %42, %cst_14 {dimension_numbers = #tpu.dot_dimension_numbers<[1], [1], [0], [0], [0, 0, 1, 0], [], []>} : vector<16x8xbf16>, vector<16x8xbf16>, vector<16x16xf32> -> vector<16x16xf32>
    %cst_15 = arith.constant dense<0xFF800000> : vector<16xf32>
    %45 = vector.multi_reduction <maximumf>, %44, %cst_15 [1] : vector<16x16xf32> to vector<16xf32>
    %46 = vector.shape_cast %45 : vector<16xf32> to vector<16x1xf32>
    %47 = vector.broadcast %46 : vector<16x1xf32> to vector<16x16xf32>
    %48 = arith.subf %44, %47 : vector<16x16xf32>
    %49 = math.exp %48 : vector<16x16xf32>
    %cst_16 = arith.constant dense<0.000000e+00> : vector<16xf32>
    %50 = vector.multi_reduction <add>, %49, %cst_16 [1] : vector<16x16xf32> to vector<16xf32>
    %51 = vector.shape_cast %50 : vector<16xf32> to vector<16x1xf32>
    %52 = tpu.reciprocal %51 {approx = true} : vector<16x1xf32> -> vector<16x1xf32>
    %53 = vector.broadcast %52 : vector<16x1xf32> to vector<16x16xf32>
    %54 = arith.mulf %49, %53 : vector<16x16xf32>
    %c0_17 = arith.constant 0 : index
    %c0_18 = arith.constant 0 : index
    %c0_19 = arith.constant 0 : index
    %c0_20 = arith.constant 0 : index
    %55 = vector.load %arg14[%c0_17, %c0_18, %c0_19, %c0_20] : memref<1x4x16x16xf32, #tpu.memory_space<vmem>>, vector<1x1x16x16xf32>
    %56 = vector.shape_cast %55 : vector<1x1x16x16xf32> to vector<16x16xf32>
    %57 = vector.shape_cast %54 : vector<16x16xf32> to vector<1x1x16x16xf32>
    tpu.vector_store %arg14[%c0_17, %c0_18, %c0_19, %c0_20], %57 {strides = array<i32>} : memref<1x4x16x16xf32, #tpu.memory_space<vmem>>, vector<1x1x16x16xf32>,
    %58 = arith.truncf %54 : vector<16x16xf32> to vector<16x16xbf16>
    %cst_21 = arith.constant dense<0.000000e+00> : vector<16x8xf32>
    %59 = tpu.matmul %58, %43, %cst_21 {dimension_numbers = #tpu.dot_dimension_numbers<[1], [0], [0], [1], [0, 0, 1, 1], [], []>} : vector<16x16xbf16>, vector<16x8xbf16>, vector<16x8xf32> -> vector<16x8xf32>
    %c0_22 = arith.constant 0 : index
    %c0_23 = arith.constant 0 : index
    %60 = vector.load %arg15[%c0_22, %c0_23] : memref<16x32xf32, #tpu.memory_space<vmem>>, vector<16x8xf32>
    tpu.vector_store %arg15[%c0_22, %c0_23], %59 {strides = array<i32>} : memref<16x32xf32, #tpu.memory_space<vmem>>, vector<16x8xf32>,
    %61 = vector.extract_strided_slice %36 {offsets = [0, 8], sizes = [16, 8], strides = [1, 1]} : vector<16x32xbf16> to vector<16x8xbf16>
    %62 = vector.extract_strided_slice %38 {offsets = [0, 8], sizes = [16, 8], strides = [1, 1]} : vector<16x32xbf16> to vector<16x8xbf16>
    %63 = vector.extract_strided_slice %40 {offsets = [0, 8], sizes = [16, 8], strides = [1, 1]} : vector<16x32xbf16> to vector<16x8xbf16>
    %cst_24 = arith.constant dense<0.000000e+00> : vector<16x16xf32>
    %64 = tpu.matmul %61, %62, %cst_24 {dimension_numbers = #tpu.dot_dimension_numbers<[1], [1], [0], [0], [0, 0, 1, 0], [], []>} : vector<16x8xbf16>, vector<16x8xbf16>, vector<16x16xf32> -> vector<16x16xf32>
    %cst_25 = arith.constant dense<0xFF800000> : vector<16xf32>
    %65 = vector.multi_reduction <maximumf>, %64, %cst_25 [1] : vector<16x16xf32> to vector<16xf32>
    %66 = vector.shape_cast %65 : vector<16xf32> to vector<16x1xf32>
    %67 = vector.broadcast %66 : vector<16x1xf32> to vector<16x16xf32>
    %68 = arith.subf %64, %67 : vector<16x16xf32>
    %69 = math.exp %68 : vector<16x16xf32>
    %cst_26 = arith.constant dense<0.000000e+00> : vector<16xf32>
    %70 = vector.multi_reduction <add>, %69, %cst_26 [1] : vector<16x16xf32> to vector<16xf32>
    %71 = vector.shape_cast %70 : vector<16xf32> to vector<16x1xf32>
    %72 = tpu.reciprocal %71 {approx = true} : vector<16x1xf32> -> vector<16x1xf32>
    %73 = vector.broadcast %72 : vector<16x1xf32> to vector<16x16xf32>
    %74 = arith.mulf %69, %73 : vector<16x16xf32>
    %c0_27 = arith.constant 0 : index
    %c1 = arith.constant 1 : index
    %c0_28 = arith.constant 0 : index
    %c0_29 = arith.constant 0 : index
    %75 = vector.load %arg14[%c0_27, %c1, %c0_28, %c0_29] : memref<1x4x16x16xf32, #tpu.memory_space<vmem>>, vector<1x1x16x16xf32>
    %76 = vector.shape_cast %75 : vector<1x1x16x16xf32> to vector<16x16xf32>
    %77 = vector.shape_cast %74 : vector<16x16xf32> to vector<1x1x16x16xf32>
    tpu.vector_store %arg14[%c0_27, %c1, %c0_28, %c0_29], %77 {strides = array<i32>} : memref<1x4x16x16xf32, #tpu.memory_space<vmem>>, vector<1x1x16x16xf32>,
    %78 = arith.truncf %74 : vector<16x16xf32> to vector<16x16xbf16>
    %cst_30 = arith.constant dense<0.000000e+00> : vector<16x8xf32>
    %79 = tpu.matmul %78, %63, %cst_30 {dimension_numbers = #tpu.dot_dimension_numbers<[1], [0], [0], [1], [0, 0, 1, 1], [], []>} : vector<16x16xbf16>, vector<16x8xbf16>, vector<16x8xf32> -> vector<16x8xf32>
    %c0_31 = arith.constant 0 : index
    %c8 = arith.constant 8 : index
    %80 = vector.load %arg15[%c0_31, %c8] : memref<16x32xf32, #tpu.memory_space<vmem>>, vector<16x8xf32>
    tpu.vector_store %arg15[%c0_31, %c8], %79 {strides = array<i32>} : memref<16x32xf32, #tpu.memory_space<vmem>>, vector<16x8xf32>,
    %81 = vector.extract_strided_slice %36 {offsets = [0, 16], sizes = [16, 8], strides = [1, 1]} : vector<16x32xbf16> to vector<16x8xbf16>
    %82 = vector.extract_strided_slice %38 {offsets = [0, 16], sizes = [16, 8], strides = [1, 1]} : vector<16x32xbf16> to vector<16x8xbf16>
    %83 = vector.extract_strided_slice %40 {offsets = [0, 16], sizes = [16, 8], strides = [1, 1]} : vector<16x32xbf16> to vector<16x8xbf16>
    %cst_32 = arith.constant dense<0.000000e+00> : vector<16x16xf32>
    %84 = tpu.matmul %81, %82, %cst_32 {dimension_numbers = #tpu.dot_dimension_numbers<[1], [1], [0], [0], [0, 0, 1, 0], [], []>} : vector<16x8xbf16>, vector<16x8xbf16>, vector<16x16xf32> -> vector<16x16xf32>
    %cst_33 = arith.constant dense<0xFF800000> : vector<16xf32>
    %85 = vector.multi_reduction <maximumf>, %84, %cst_33 [1] : vector<16x16xf32> to vector<16xf32>
    %86 = vector.shape_cast %85 : vector<16xf32> to vector<16x1xf32>
    %87 = vector.broadcast %86 : vector<16x1xf32> to vector<16x16xf32>
    %88 = arith.subf %84, %87 : vector<16x16xf32>
    %89 = math.exp %88 : vector<16x16xf32>
    %cst_34 = arith.constant dense<0.000000e+00> : vector<16xf32>
    %90 = vector.multi_reduction <add>, %89, %cst_34 [1] : vector<16x16xf32> to vector<16xf32>
    %91 = vector.shape_cast %90 : vector<16xf32> to vector<16x1xf32>
    %92 = tpu.reciprocal %91 {approx = true} : vector<16x1xf32> -> vector<16x1xf32>
    %93 = vector.broadcast %92 : vector<16x1xf32> to vector<16x16xf32>
    %94 = arith.mulf %89, %93 : vector<16x16xf32>
    %c0_35 = arith.constant 0 : index
    %c2 = arith.constant 2 : index
    %c0_36 = arith.constant 0 : index
    %c0_37 = arith.constant 0 : index
    %95 = vector.load %arg14[%c0_35, %c2, %c0_36, %c0_37] : memref<1x4x16x16xf32, #tpu.memory_space<vmem>>, vector<1x1x16x16xf32>
    %96 = vector.shape_cast %95 : vector<1x1x16x16xf32> to vector<16x16xf32>
    %97 = vector.shape_cast %94 : vector<16x16xf32> to vector<1x1x16x16xf32>
    tpu.vector_store %arg14[%c0_35, %c2, %c0_36, %c0_37], %97 {strides = array<i32>} : memref<1x4x16x16xf32, #tpu.memory_space<vmem>>, vector<1x1x16x16xf32>,
    %98 = arith.truncf %94 : vector<16x16xf32> to vector<16x16xbf16>
    %cst_38 = arith.constant dense<0.000000e+00> : vector<16x8xf32>
    %99 = tpu.matmul %98, %83, %cst_38 {dimension_numbers = #tpu.dot_dimension_numbers<[1], [0], [0], [1], [0, 0, 1, 1], [], []>} : vector<16x16xbf16>, vector<16x8xbf16>, vector<16x8xf32> -> vector<16x8xf32>
    %c0_39 = arith.constant 0 : index
    %c16 = arith.constant 16 : index
    %100 = vector.load %arg15[%c0_39, %c16] : memref<16x32xf32, #tpu.memory_space<vmem>>, vector<16x8xf32>
    tpu.vector_store %arg15[%c0_39, %c16], %99 {strides = array<i32>} : memref<16x32xf32, #tpu.memory_space<vmem>>, vector<16x8xf32>,
    %101 = vector.extract_strided_slice %36 {offsets = [0, 24], sizes = [16, 8], strides = [1, 1]} : vector<16x32xbf16> to vector<16x8xbf16>
    %102 = vector.extract_strided_slice %38 {offsets = [0, 24], sizes = [16, 8], strides = [1, 1]} : vector<16x32xbf16> to vector<16x8xbf16>
    %103 = vector.extract_strided_slice %40 {offsets = [0, 24], sizes = [16, 8], strides = [1, 1]} : vector<16x32xbf16> to vector<16x8xbf16>
    %cst_40 = arith.constant dense<0.000000e+00> : vector<16x16xf32>
    %104 = tpu.matmul %101, %102, %cst_40 {dimension_numbers = #tpu.dot_dimension_numbers<[1], [1], [0], [0], [0, 0, 1, 0], [], []>} : vector<16x8xbf16>, vector<16x8xbf16>, vector<16x16xf32> -> vector<16x16xf32>
    %cst_41 = arith.constant dense<0xFF800000> : vector<16xf32>
    %105 = vector.multi_reduction <maximumf>, %104, %cst_41 [1] : vector<16x16xf32> to vector<16xf32>
    %106 = vector.shape_cast %105 : vector<16xf32> to vector<16x1xf32>
    %107 = vector.broadcast %106 : vector<16x1xf32> to vector<16x16xf32>
    %108 = arith.subf %104, %107 : vector<16x16xf32>
    %109 = math.exp %108 : vector<16x16xf32>
    %cst_42 = arith.constant dense<0.000000e+00> : vector<16xf32>
    %110 = vector.multi_reduction <add>, %109, %cst_42 [1] : vector<16x16xf32> to vector<16xf32>
    %111 = vector.shape_cast %110 : vector<16xf32> to vector<16x1xf32>
    %112 = tpu.reciprocal %111 {approx = true} : vector<16x1xf32> -> vector<16x1xf32>
    %113 = vector.broadcast %112 : vector<16x1xf32> to vector<16x16xf32>
    %114 = arith.mulf %109, %113 : vector<16x16xf32>
    %c0_43 = arith.constant 0 : index
    %c3 = arith.constant 3 : index
    %c0_44 = arith.constant 0 : index
    %c0_45 = arith.constant 0 : index
    %115 = vector.load %arg14[%c0_43, %c3, %c0_44, %c0_45] : memref<1x4x16x16xf32, #tpu.memory_space<vmem>>, vector<1x1x16x16xf32>
    %116 = vector.shape_cast %115 : vector<1x1x16x16xf32> to vector<16x16xf32>
    %117 = vector.shape_cast %114 : vector<16x16xf32> to vector<1x1x16x16xf32>
    tpu.vector_store %arg14[%c0_43, %c3, %c0_44, %c0_45], %117 {strides = array<i32>} : memref<1x4x16x16xf32, #tpu.memory_space<vmem>>, vector<1x1x16x16xf32>,
    %118 = arith.truncf %114 : vector<16x16xf32> to vector<16x16xbf16>
    %cst_46 = arith.constant dense<0.000000e+00> : vector<16x8xf32>
    %119 = tpu.matmul %118, %103, %cst_46 {dimension_numbers = #tpu.dot_dimension_numbers<[1], [0], [0], [1], [0, 0, 1, 1], [], []>} : vector<16x16xbf16>, vector<16x8xbf16>, vector<16x8xf32> -> vector<16x8xf32>
    %c0_47 = arith.constant 0 : index
    %c24 = arith.constant 24 : index
    %120 = vector.load %arg15[%c0_47, %c24] : memref<16x32xf32, #tpu.memory_space<vmem>>, vector<16x8xf32>
    tpu.vector_store %arg15[%c0_47, %c24], %119 {strides = array<i32>} : memref<16x32xf32, #tpu.memory_space<vmem>>, vector<16x8xf32>,
    %c0_48 = arith.constant 0 : index
    %c0_49 = arith.constant 0 : index
    %121 = vector.load %arg15[%c0_48, %c0_49] : memref<16x32xf32, #tpu.memory_space<vmem>>, vector<16x32xf32>
    %122 = arith.truncf %121 : vector<16x32xf32> to vector<16x32xbf16>
    %c0_50 = arith.constant 0 : index
    %c0_51 = arith.constant 0 : index
    %123 = vector.load %arg5[%c0_50, %c0_51] : memref<32x32xbf16, #tpu.memory_space<vmem>>, vector<32x32xbf16>
    %cst_52 = arith.constant dense<0.000000e+00> : vector<16x32xf32>
    %124 = tpu.matmul %122, %123, %cst_52 {dimension_numbers = #tpu.dot_dimension_numbers<[1], [0], [0], [1], [0, 0, 1, 1], [], []>} : vector<16x32xbf16>, vector<32x32xbf16>, vector<16x32xf32> -> vector<16x32xf32>
    %c0_53 = arith.constant 0 : index
    %c0_54 = arith.constant 0 : index
    %125 = vector.load %arg6[%c0_53, %c0_54] : memref<1x32xf32, #tpu.memory_space<vmem>>, vector<1x32xf32>
    %126 = vector.shape_cast %125 : vector<1x32xf32> to vector<32xf32>
    %127 = vector.shape_cast %126 : vector<32xf32> to vector<1x32xf32>
    %128 = vector.broadcast %127 : vector<1x32xf32> to vector<16x32xf32>
    %129 = arith.addf %124, %128 : vector<16x32xf32>
    %130 = arith.addf %1, %129 : vector<16x32xf32>
    %c0_55 = arith.constant 0 : index
    %c0_56 = arith.constant 0 : index
    %131 = vector.load %arg7[%c0_55, %c0_56] : memref<1x32xf32, #tpu.memory_space<vmem>>, vector<1x32xf32>
    %132 = vector.shape_cast %131 : vector<1x32xf32> to vector<32xf32>
    %c0_57 = arith.constant 0 : index
    %c0_58 = arith.constant 0 : index
    %133 = vector.load %arg8[%c0_57, %c0_58] : memref<1x32xf32, #tpu.memory_space<vmem>>, vector<1x32xf32>
    %134 = vector.shape_cast %133 : vector<1x32xf32> to vector<32xf32>
    %cst_59 = arith.constant dense<0.000000e+00> : vector<16xf32>
    %135 = vector.multi_reduction <add>, %130, %cst_59 [1] : vector<16x32xf32> to vector<16xf32>
    %136 = vector.shape_cast %135 : vector<16xf32> to vector<16x1xf32>
    %cst_60 = arith.constant 3.200000e+01 : f32
    %137 = vector.broadcast %cst_60 : f32 to vector<16x1xf32>
    %138 = arith.divf %136, %137 : vector<16x1xf32>
    %139 = vector.broadcast %138 : vector<16x1xf32> to vector<16x32xf32>
    %140 = arith.subf %130, %139 : vector<16x32xf32>
    %141 = arith.mulf %140, %140 : vector<16x32xf32>
    %cst_61 = arith.constant dense<0.000000e+00> : vector<16xf32>
    %142 = vector.multi_reduction <add>, %141, %cst_61 [1] : vector<16x32xf32> to vector<16xf32>
    %143 = vector.shape_cast %142 : vector<16xf32> to vector<16x1xf32>
    %cst_62 = arith.constant 3.200000e+01 : f32
    %144 = vector.broadcast %cst_62 : f32 to vector<16x1xf32>
    %145 = arith.divf %143, %144 : vector<16x1xf32>
    %146 = vector.broadcast %138 : vector<16x1xf32> to vector<16x32xf32>
    %147 = arith.subf %130, %146 : vector<16x32xf32>
    %cst_63 = arith.constant 9.99999974E-6 : f32
    %148 = vector.broadcast %cst_63 : f32 to vector<16x1xf32>
    %149 = arith.addf %145, %148 : vector<16x1xf32>
    %150 = math.rsqrt %149 : vector<16x1xf32>
    %151 = vector.broadcast %150 : vector<16x1xf32> to vector<16x32xf32>
    %152 = arith.mulf %147, %151 : vector<16x32xf32>
    %153 = vector.shape_cast %132 : vector<32xf32> to vector<1x32xf32>
    %154 = vector.broadcast %153 : vector<1x32xf32> to vector<16x32xf32>
    %155 = arith.mulf %152, %154 : vector<16x32xf32>
    %156 = vector.shape_cast %134 : vector<32xf32> to vector<1x32xf32>
    %157 = vector.broadcast %156 : vector<1x32xf32> to vector<16x32xf32>
    %158 = arith.addf %155, %157 : vector<16x32xf32>
    %159 = arith.truncf %158 : vector<16x32xf32> to vector<16x32xbf16>
    %c0_64 = arith.constant 0 : index
    %c0_65 = arith.constant 0 : index
    %160 = vector.load %arg9[%c0_64, %c0_65] : memref<32x128xbf16, #tpu.memory_space<vmem>>, vector<32x128xbf16>
    %cst_66 = arith.constant dense<0.000000e+00> : vector<16x128xf32>
    %161 = tpu.matmul %159, %160, %cst_66 {dimension_numbers = #tpu.dot_dimension_numbers<[1], [0], [0], [1], [0, 0, 1, 1], [], []>} : vector<16x32xbf16>, vector<32x128xbf16>, vector<16x128xf32> -> vector<16x128xf32>
    %c0_67 = arith.constant 0 : index
    %c0_68 = arith.constant 0 : index
    %162 = vector.load %arg10[%c0_67, %c0_68] : memref<1x128xf32, #tpu.memory_space<vmem>>, vector<1x128xf32>
    %163 = vector.shape_cast %162 : vector<1x128xf32> to vector<128xf32>
    %164 = vector.shape_cast %163 : vector<128xf32> to vector<1x128xf32>
    %165 = vector.broadcast %164 : vector<1x128xf32> to vector<16x128xf32>
    %166 = arith.addf %161, %165 : vector<16x128xf32>
    %cst_69 = arith.constant 5.000000e-01 : f32
    %167 = vector.broadcast %cst_69 : f32 to vector<16x128xf32>
    %168 = arith.mulf %167, %166 : vector<16x128xf32>
    %cst_70 = arith.constant 0.707106769 : f32
    %169 = vector.broadcast %cst_70 : f32 to vector<16x128xf32>
    %170 = arith.mulf %166, %169 : vector<16x128xf32>
    %171 = math.erf %170 : vector<16x128xf32>
    %cst_71 = arith.constant 1.000000e+00 : f32
    %172 = vector.broadcast %cst_71 : f32 to vector<16x128xf32>
    %173 = arith.addf %172, %171 : vector<16x128xf32>
    %174 = arith.mulf %168, %173 : vector<16x128xf32>
    %175 = arith.truncf %174 : vector<16x128xf32> to vector<16x128xbf16>
    %c0_72 = arith.constant 0 : index
    %c0_73 = arith.constant 0 : index
    %176 = vector.load %arg11[%c0_72, %c0_73] : memref<128x32xbf16, #tpu.memory_space<vmem>>, vector<128x32xbf16>
    %cst_74 = arith.constant dense<0.000000e+00> : vector<16x32xf32>
    %177 = tpu.matmul %175, %176, %cst_74 {dimension_numbers = #tpu.dot_dimension_numbers<[1], [0], [0], [1], [0, 0, 1, 1], [], []>} : vector<16x128xbf16>, vector<128x32xbf16>, vector<16x32xf32> -> vector<16x32xf32>
    %c0_75 = arith.constant 0 : index
    %c0_76 = arith.constant 0 : index
    %178 = vector.load %arg12[%c0_75, %c0_76] : memref<1x32xf32, #tpu.memory_space<vmem>>, vector<1x32xf32>
    %179 = vector.shape_cast %178 : vector<1x32xf32> to vector<32xf32>
    %180 = vector.shape_cast %179 : vector<32xf32> to vector<1x32xf32>
    %181 = vector.broadcast %180 : vector<1x32xf32> to vector<16x32xf32>
    %182 = arith.addf %177, %181 : vector<16x32xf32>
    %183 = arith.addf %130, %182 : vector<16x32xf32>
    %c0_77 = arith.constant 0 : index
    %c0_78 = arith.constant 0 : index
    %c0_79 = arith.constant 0 : index
    %184 = vector.load %arg13[%c0_77, %c0_78, %c0_79] : memref<1x16x32xf32, #tpu.memory_space<vmem>>, vector<1x16x32xf32>
    %185 = vector.shape_cast %184 : vector<1x16x32xf32> to vector<16x32xf32>
    %186 = vector.shape_cast %183 : vector<16x32xf32> to vector<1x16x32xf32>
    tpu.vector_store %arg13[%c0_77, %c0_78, %c0_79], %186 {strides = array<i32>} : memref<1x16x32xf32, #tpu.memory_space<vmem>>, vector<1x16x32xf32>,
    return
  }
  func.func @transform_0(%arg0: i32) -> (i32, i32, i32) {
    %c0_i32 = arith.constant 0 : i32
    %c0_i32_0 = arith.constant 0 : i32
    %c0_i32_1 = arith.constant 0 : i32
    return %arg0, %c0_i32, %c0_i32_0 : i32, i32, i32
  }
  func.func @transform_1(%arg0: i32) -> (i32, i32) {
    %c0_i32 = arith.constant 0 : i32
    %c0_i32_0 = arith.constant 0 : i32
    %c0_i32_1 = arith.constant 0 : i32
    return %c0_i32, %c0_i32_0 : i32, i32
  }
  func.func @transform_2(%arg0: i32) -> (i32, i32) {
    %c0_i32 = arith.constant 0 : i32
    %c0_i32_0 = arith.constant 0 : i32
    %c0_i32_1 = arith.constant 0 : i32
    return %c0_i32, %c0_i32_0 : i32, i32
  }
  func.func @transform_3(%arg0: i32) -> (i32, i32) {
    %c0_i32 = arith.constant 0 : i32
    %c0_i32_0 = arith.constant 0 : i32
    %c0_i32_1 = arith.constant 0 : i32
    return %c0_i32, %c0_i32_0 : i32, i32
  }
  func.func @transform_4(%arg0: i32) -> (i32, i32) {
    %c0_i32 = arith.constant 0 : i32
    %c0_i32_0 = arith.constant 0 : i32
    %c0_i32_1 = arith.constant 0 : i32
    return %c0_i32, %c0_i32_0 : i32, i32
  }
  func.func @transform_5(%arg0: i32) -> (i32, i32) {
    %c0_i32 = arith.constant 0 : i32
    %c0_i32_0 = arith.constant 0 : i32
    %c0_i32_1 = arith.constant 0 : i32
    return %c0_i32, %c0_i32_0 : i32, i32
  }
  func.func @transform_6(%arg0: i32) -> (i32, i32) {
    %c0_i32 = arith.constant 0 : i32
    %c0_i32_0 = arith.constant 0 : i32
    %c0_i32_1 = arith.constant 0 : i32
    return %c0_i32, %c0_i32_0 : i32, i32
  }
  func.func @transform_7(%arg0: i32) -> (i32, i32) {
    %c0_i32 = arith.constant 0 : i32
    %c0_i32_0 = arith.constant 0 : i32
    %c0_i32_1 = arith.constant 0 : i32
    return %c0_i32, %c0_i32_0 : i32, i32
  }
  func.func @transform_8(%arg0: i32) -> (i32, i32) {
    %c0_i32 = arith.constant 0 : i32
    %c0_i32_0 = arith.constant 0 : i32
    %c0_i32_1 = arith.constant 0 : i32
    return %c0_i32, %c0_i32_0 : i32, i32
  }
  func.func @transform_9(%arg0: i32) -> (i32, i32) {
    %c0_i32 = arith.constant 0 : i32
    %c0_i32_0 = arith.constant 0 : i32
    %c0_i32_1 = arith.constant 0 : i32
    return %c0_i32, %c0_i32_0 : i32, i32
  }
  func.func @transform_10(%arg0: i32) -> (i32, i32) {
    %c0_i32 = arith.constant 0 : i32
    %c0_i32_0 = arith.constant 0 : i32
    %c0_i32_1 = arith.constant 0 : i32
    return %c0_i32, %c0_i32_0 : i32, i32
  }
  func.func @transform_11(%arg0: i32) -> (i32, i32) {
    %c0_i32 = arith.constant 0 : i32
    %c0_i32_0 = arith.constant 0 : i32
    %c0_i32_1 = arith.constant 0 : i32
    return %c0_i32, %c0_i32_0 : i32, i32
  }
  func.func @transform_12(%arg0: i32) -> (i32, i32, i32) {
    %c0_i32 = arith.constant 0 : i32
    %c0_i32_0 = arith.constant 0 : i32
    %c0_i32_1 = arith.constant 0 : i32
    return %arg0, %c0_i32, %c0_i32_0 : i32, i32, i32
  }
  func.func @transform_13(%arg0: i32) -> (i32, i32, i32, i32) {
    %c0_i32 = arith.constant 0 : i32
    %c0_i32_0 = arith.constant 0 : i32
    %c0_i32_1 = arith.constant 0 : i32
    %c0_i32_2 = arith.constant 0 : i32
    return %arg0, %c0_i32, %c0_i32_0, %c0_i32_1 : i32, i32, i32, i32
  }
}

</mosaic_0001>

<llo_original>
// kernel: tpu_custom_call.1
$region0: #{tpu_custom_call.1}
  #allocation0 [shape = 'u32[]', space=smem, size = 0x4, offset = 0x4, fixed_abs, tag = 'smem constant byte address 0x4 - core index']
  #allocation1 [shape = 'u32[144,128]{1,0:T(1,128)}', space=vmem, size = 0x12000, scoped, tag = 'internal scratch']
  #allocation2 [shape = 'f32[16,32]{1,0:T(8,128)}', space=vmem, size = 0x2000, scoped, tag = 'scratch operand']
  %s0 = inlined_call_operand.vmem [shape: f32[2,16,32], index: 0, kind: input, shape index: {}]
  %s1 = inlined_call_operand.vmem [shape: f32[1,32], index: 1, kind: input, shape index: {}]
  %s2 = inlined_call_operand.vmem [shape: f32[1,32], index: 2, kind: input, shape index: {}]
  %s3 = inlined_call_operand.vmem [shape: bf16[32,96], index: 3, kind: input, shape index: {}]
  %s4 = inlined_call_operand.vmem [shape: bf16[32,32], index: 4, kind: input, shape index: {}]
  %s5 = inlined_call_operand.hbm [shape: f32[1,32], index: 5, kind: input, shape index: {}]
  %s6 = inlined_call_operand.hbm [shape: f32[1,32], index: 6, kind: input, shape index: {}]
  %s7 = inlined_call_operand.hbm [shape: f32[1,32], index: 7, kind: input, shape index: {}]
  %s8 = inlined_call_operand.vmem [shape: bf16[32,128], index: 8, kind: input, shape index: {}]
  %s9 = inlined_call_operand.hbm [shape: f32[1,128], index: 9, kind: input, shape index: {}]
  %s10 = inlined_call_operand.vmem [shape: bf16[128,32], index: 10, kind: input, shape index: {}]
  %s11 = inlined_call_operand.vmem [shape: f32[1,32], index: 11, kind: input, shape index: {}]
  %s12 = inlined_call_operand.hbm [shape: f32[2,16,32], index: 12, kind: output, shape index: {0}]
  %s13 = inlined_call_operand.hbm [shape: f32[2,4,16,16], index: 13, kind: output, shape index: {1}]
  %14 = xla_tuple %s12, %s13
  %s15 = sld [smem:[#allocation0]]
  $region105: #{tpu_custom_call.1} parent=0
    _
  %s17 = ssub.s32 1, %s15
  %s18 = scalar_select 0, %s17, %s15
  $region1: #{tpu_custom_call.1} parent=0
    #allocation3 [shape = 'u8[512]{0}', space=vmem, size = 0x400, scoped, tag = 'input window, operand 5, single buffered']
    #allocation4 [shape = 's32[2]{0}', space=sflag, size = 0x8, scoped, tag = 'scoped memory for tpu_custom_call.1']
    #allocation5 [shape = 's32[2]{0}', space=sflag, size = 0x8, scoped, tag = 'scoped memory for tpu_custom_call.1']
    #allocation6 [shape = 'u8[512]{0}', space=vmem, size = 0x400, scoped, tag = 'input window, operand 6, single buffered']
    #allocation7 [shape = 's32[1]{0}', space=sflag, size = 0x4, scoped, tag = 'scoped memory for tpu_custom_call.1']
    #allocation8 [shape = 'u8[512]{0}', space=vmem, size = 0x400, scoped, tag = 'input window, operand 7, single buffered']
    #allocation9 [shape = 'u8[512]{0}', space=vmem, size = 0x400, scoped, tag = 'input window, operand 9, single buffered']
    #allocation10 [shape = 's32[1]{0}', space=sflag, size = 0x4, scoped, tag = 'scoped memory for tpu_custom_call.1']
    #allocation11 [shape = 'u8[16384]{0}', space=vmem, size = 0x4000, scoped, tag = 'output window, operand 0']
    #allocation12 [shape = 'u8[65536]{0}', space=vmem, size = 0x10000, scoped, tag = 'output window, operand 1']
    #allocation13 [shape = 's32[2]{0}', space=sflag, size = 0x8, scoped, tag = 'scoped memory for tpu_custom_call.1']
    %19 = vsyncpa [#allocation4], 0
    %20 = vsyncpa [#allocation7], 0
    %21 = vsyncpa [#allocation10], 0
    %22 = vsyncpa [#allocation5], 0
    %s23 = scalar_lea.sflag [#allocation5], 1
    %24 = vsyncpa %s23, 0
    %25 = vsyncpa [#allocation13], 0
    %s26 = scalar_lea.sflag [#allocation13], 1
    %27 = vsyncpa %s26, 0
    loop: start=0, step=1, limit=4
    $region2: #{tpu_custom_call.1} parent=1 // loop_pre_header
      _
    $region3: #{tpu_custom_call.1} parent=1 // loop_header
      %s29 = sphi 0, %s33
      %p30 = scmp.ge.s32.totalorder %s29, 4
      %s39 = sphi 0, %s41
      %s42 = sphi 0, %s39
      %s43 = sphi 0, %s42
      %s59 = sphi 0, %s43
      %s63 = sphi 0, %s63
      %s65 = sphi 0, %s63
      %s66 = sphi 0, %s65
      %s80 = sphi 0, %s66
      %s84 = sphi 0, %s84
      %s86 = sphi 0, %s84
      %s87 = sphi 0, %s86
      %s101 = sphi 0, %s87
      %s105 = sphi 0, %s105
      %s107 = sphi 0, %s105
      %s108 = sphi 0, %s107
      %s122 = sphi 0, %s108
      %s126 = sphi 0, %s126
      %s128 = sphi 0, %s126
      %s129 = sphi 0, %s128
      %s143 = sphi 0, %s129
      %s147 = sphi 0, %s147
      %s149 = sphi 0, %s147
      %s150 = sphi 0, %s149
      %s164 = sphi 0, %s150
      %s168 = sphi 0, %s168
      %s170 = sphi 0, %s168
      %s171 = sphi 0, %s170
      %s185 = sphi 0, %s171
      %s189 = sphi 0, %s189
      %s191 = sphi 0, %s189
      %s192 = sphi 0, %s191
      %s206 = sphi 0, %s192
      %s210 = sphi 0, %s210
      %s212 = sphi 0, %s210
      %s213 = sphi 0, %s212
      %s227 = sphi 0, %s213
      %s231 = sphi 0, %s231
      %s233 = sphi 0, %s231
      %s234 = sphi 0, %s233
      %s248 = sphi 0, %s234
      %s252 = sphi 0, %s252
      %s254 = sphi 0, %s252
      %s255 = sphi 0, %s254
      %s269 = sphi 0, %s255
      %s273 = sphi 0, %s273
      %s275 = sphi 0, %s273
      %s276 = sphi 0, %s275
      %s290 = sphi 0, %s276
      %s296 = sphi 0, %s298
      %s299 = sphi 0, %s296
      %s300 = sphi 0, %s299
      %s316 = sphi 0, %s300
      %s322 = sphi 0, %s324
      %s325 = sphi 0, %s322
      %s326 = sphi 0, %s325
      %s342 = sphi 0, %s326
    $region4: #{tpu_custom_call.1} parent=1 // loop_header_branch
      %32 = sbr.rel (%p30) target = $region8
    $region5: #{tpu_custom_call.1} parent=1 // loop_body
      %s34 = ssub.s32 %s29, 1
      %s35 = ssub.s32 %s29, 2
      %s36 = sadd.s32 %s29, 1
      %s37 = ssub.s32 %s29, %s36
      %p38 = scmp.eq.s32.totalorder %s37, 0
      %s40 = sadd.s32 %s39, 1
      %s41 = scalar_select %p38, %s39, %s40
      %p44 = pneg %p38
      %p45 = scmp.eq.s32.totalorder %s29, 1
      %p46 = por %p44, %p45
      %p47 = scmp.ne.s32.totalorder %s39, %s42
      %p48 = scmp.eq.s32.totalorder %s29, 0
      %p49 = por %p47, %p48
      %p50 = scmp.ne.s32.totalorder %s39, %s42
      %p51 = scmp.eq.s32.totalorder %s34, 1
      %p52 = por %p50, %p51
      %p53 = scmp.ne.s32.totalorder %s42, %s43
      %p54 = scmp.eq.s32.totalorder %s34, 0
      %p55 = por %p53, %p54
      %p56 = scmp.ne.s32.totalorder %s42, %s43
      %p57 = scmp.eq.s32.totalorder %s35, 1
      %p58 = por %p56, %p57
      %p60 = scmp.ne.s32.totalorder %s43, %s59
      %p61 = scmp.eq.s32.totalorder %s35, 0
      %p62 = por %p60, %p61
      %s64 = sadd.s32 %s63, 1
      %p67 = scmp.eq.s32.totalorder %s29, 1
      %p68 = scmp.ne.s32.totalorder %s63, %s65
      %p69 = scmp.eq.s32.totalorder %s29, 0
      %p70 = por %p68, %p69
      %p71 = scmp.ne.s32.totalorder %s63, %s65
      %p72 = scmp.eq.s32.totalorder %s34, 1
      %p73 = por %p71, %p72
      %p74 = scmp.ne.s32.totalorder %s65, %s66
      %p75 = scmp.eq.s32.totalorder %s34, 0
      %p76 = por %p74, %p75
      %p77 = scmp.ne.s32.totalorder %s65, %s66
      %p78 = scmp.eq.s32.totalorder %s35, 1
      %p79 = por %p77, %p78
      %p81 = scmp.ne.s32.totalorder %s66, %s80
      %p82 = scmp.eq.s32.totalorder %s35, 0
      %p83 = por %p81, %p82
      %s85 = sadd.s32 %s84, 1
      %p88 = scmp.eq.s32.totalorder %s29, 1
      %p89 = scmp.ne.s32.totalorder %s84, %s86
      %p90 = scmp.eq.s32.totalorder %s29, 0
      %p91 = por %p89, %p90
      %p92 = scmp.ne.s32.totalorder %s84, %s86
      %p93 = scmp.eq.s32.totalorder %s34, 1
      %p94 = por %p92, %p93
      %p95 = scmp.ne.s32.totalorder %s86, %s87
      %p96 = scmp.eq.s32.totalorder %s34, 0
      %p97 = por %p95, %p96
      %p98 = scmp.ne.s32.totalorder %s86, %s87
      %p99 = scmp.eq.s32.totalorder %s35, 1
      %p100 = por %p98, %p99
      %p102 = scmp.ne.s32.totalorder %s87, %s101
      %p103 = scmp.eq.s32.totalorder %s35, 0
      %p104 = por %p102, %p103
      %s106 = sadd.s32 %s105, 1
      %p109 = scmp.eq.s32.totalorder %s29, 1
      %p110 = scmp.ne.s32.totalorder %s105, %s107
      %p111 = scmp.eq.s32.totalorder %s29, 0
      %p112 = por %p110, %p111
      %p113 = scmp.ne.s32.totalorder %s105, %s107
      %p114 = scmp.eq.s32.totalorder %s34, 1
      %p115 = por %p113, %p114
      %p116 = scmp.ne.s32.totalorder %s107, %s108
      %p117 = scmp.eq.s32.totalorder %s34, 0
      %p118 = por %p116, %p117
      %p119 = scmp.ne.s32.totalorder %s107, %s108
      %p120 = scmp.eq.s32.totalorder %s35, 1
      %p121 = por %p119, %p120
      %p123 = scmp.ne.s32.totalorder %s108, %s122
      %p124 = scmp.eq.s32.totalorder %s35, 0
      %p125 = por %p123, %p124
      %s127 = sadd.s32 %s126, 1
      %p130 = scmp.eq.s32.totalorder %s29, 1
      %p131 = scmp.ne.s32.totalorder %s126, %s128
      %p132 = scmp.eq.s32.totalorder %s29, 0
      %p133 = por %p131, %p132
      %p134 = scmp.ne.s32.totalorder %s126, %s128
      %p135 = scmp.eq.s32.totalorder %s34, 1
      %p136 = por %p134, %p135
      %p137 = scmp.ne.s32.totalorder %s128, %s129
      %p138 = scmp.eq.s32.totalorder %s34, 0
      %p139 = por %p137, %p138
      %p140 = scmp.ne.s32.totalorder %s128, %s129
      %p141 = scmp.eq.s32.totalorder %s35, 1
      %p142 = por %p140, %p141
      %p144 = scmp.ne.s32.totalorder %s129, %s143
      %p145 = scmp.eq.s32.totalorder %s35, 0
      %p146 = por %p144, %p145
      %s148 = sadd.s32 %s147, 1
      %p151 = scmp.eq.s32.totalorder %s29, 1
      %p152 = scmp.ne.s32.totalorder %s147, %s149
      %p153 = scmp.eq.s32.totalorder %s29, 0
      %p154 = por %p152, %p153
      %p155 = scmp.ne.s32.totalorder %s147, %s149
      %p156 = scmp.eq.s32.totalorder %s34, 1
      %p157 = por %p155, %p156
      %p158 = scmp.ne.s32.totalorder %s149, %s150
      %p159 = scmp.eq.s32.totalorder %s34, 0
      %p160 = por %p158, %p159
      %p161 = scmp.ne.s32.totalorder %s149, %s150
      %p162 = scmp.eq.s32.totalorder %s35, 1
      %p163 = por %p161, %p162
      %p165 = scmp.ne.s32.totalorder %s150, %s164
      %p166 = scmp.eq.s32.totalorder %s35, 0
      %p167 = por %p165, %p166
      %s169 = sadd.s32 %s168, 1
      %p172 = scmp.eq.s32.totalorder %s29, 1
      %p173 = scmp.ne.s32.totalorder %s168, %s170
      %p174 = scmp.eq.s32.totalorder %s29, 0
      %p175 = por %p173, %p174
      %p176 = scmp.ne.s32.totalorder %s168, %s170
      %p177 = scmp.eq.s32.totalorder %s34, 1
      %p178 = por %p176, %p177
      %p179 = scmp.ne.s32.totalorder %s170, %s171
      %p180 = scmp.eq.s32.totalorder %s34, 0
      %p181 = por %p179, %p180
      %p182 = scmp.ne.s32.totalorder %s170, %s171
      %p183 = scmp.eq.s32.totalorder %s35, 1
      %p184 = por %p182, %p183
      %p186 = scmp.ne.s32.totalorder %s171, %s185
      %p187 = scmp.eq.s32.totalorder %s35, 0
      %p188 = por %p186, %p187
      %s190 = sadd.s32 %s189, 1
      %p193 = scmp.eq.s32.totalorder %s29, 1
      %p194 = scmp.ne.s32.totalorder %s189, %s191
      %p195 = scmp.eq.s32.totalorder %s29, 0
      %p196 = por %p194, %p195
      %p197 = scmp.ne.s32.totalorder %s189, %s191
      %p198 = scmp.eq.s32.totalorder %s34, 1
      %p199 = por %p197, %p198
      %p200 = scmp.ne.s32.totalorder %s191, %s192
      %p201 = scmp.eq.s32.totalorder %s34, 0
      %p202 = por %p200, %p201
      %p203 = scmp.ne.s32.totalorder %s191, %s192
      %p204 = scmp.eq.s32.totalorder %s35, 1
      %p205 = por %p203, %p204
      %p207 = scmp.ne.s32.totalorder %s192, %s206
      %p208 = scmp.eq.s32.totalorder %s35, 0
      %p209 = por %p207, %p208
      %s211 = sadd.s32 %s210, 1
      %p214 = scmp.eq.s32.totalorder %s29, 1
      %p215 = scmp.ne.s32.totalorder %s210, %s212
      %p216 = scmp.eq.s32.totalorder %s29, 0
      %p217 = por %p215, %p216
      %p218 = scmp.ne.s32.totalorder %s210, %s212
      %p219 = scmp.eq.s32.totalorder %s34, 1
      %p220 = por %p218, %p219
      %p221 = scmp.ne.s32.totalorder %s212, %s213
      %p222 = scmp.eq.s32.totalorder %s34, 0
      %p223 = por %p221, %p222
      %p224 = scmp.ne.s32.totalorder %s212, %s213
      %p225 = scmp.eq.s32.totalorder %s35, 1
      %p226 = por %p224, %p225
      %p228 = scmp.ne.s32.totalorder %s213, %s227
      %p229 = scmp.eq.s32.totalorder %s35, 0
      %p230 = por %p228, %p229
      %s232 = sadd.s32 %s231, 1
      %p235 = scmp.eq.s32.totalorder %s29, 1
      %p236 = scmp.ne.s32.totalorder %s231, %s233
      %p237 = scmp.eq.s32.totalorder %s29, 0
      %p238 = por %p236, %p237
      %p239 = scmp.ne.s32.totalorder %s231, %s233
      %p240 = scmp.eq.s32.totalorder %s34, 1
      %p241 = por %p239, %p240
      %p242 = scmp.ne.s32.totalorder %s233, %s234
      %p243 = scmp.eq.s32.totalorder %s34, 0
      %p244 = por %p242, %p243
      %p245 = scmp.ne.s32.totalorder %s233, %s234
      %p246 = scmp.eq.s32.totalorder %s35, 1
      %p247 = por %p245, %p246
      %p249 = scmp.ne.s32.totalorder %s234, %s248
      %p250 = scmp.eq.s32.totalorder %s35, 0
      %p251 = por %p249, %p250
      %s253 = sadd.s32 %s252, 1
      %p256 = scmp.eq.s32.totalorder %s29, 1
      %p257 = scmp.ne.s32.totalorder %s252, %s254
      %p258 = scmp.eq.s32.totalorder %s29, 0
      %p259 = por %p257, %p258
      %p260 = scmp.ne.s32.totalorder %s252, %s254
      %p261 = scmp.eq.s32.totalorder %s34, 1
      %p262 = por %p260, %p261
      %p263 = scmp.ne.s32.totalorder %s254, %s255
      %p264 = scmp.eq.s32.totalorder %s34, 0
      %p265 = por %p263, %p264
      %p266 = scmp.ne.s32.totalorder %s254, %s255
      %p267 = scmp.eq.s32.totalorder %s35, 1
      %p268 = por %p266, %p267
      %p270 = scmp.ne.s32.totalorder %s255, %s269
      %p271 = scmp.eq.s32.totalorder %s35, 0
      %p272 = por %p270, %p271
      %s274 = sadd.s32 %s273, 1
      %p277 = scmp.eq.s32.totalorder %s29, 1
      %p278 = scmp.ne.s32.totalorder %s273, %s275
      %p279 = scmp.eq.s32.totalorder %s29, 0
      %p280 = por %p278, %p279
      %p281 = scmp.ne.s32.totalorder %s273, %s275
      %p282 = scmp.eq.s32.totalorder %s34, 1
      %p283 = por %p281, %p282
      %p284 = scmp.ne.s32.totalorder %s275, %s276
      %p285 = scmp.eq.s32.totalorder %s34, 0
      %p286 = por %p284, %p285
      %p287 = scmp.ne.s32.totalorder %s275, %s276
      %p288 = scmp.eq.s32.totalorder %s35, 1
      %p289 = por %p287, %p288
      %p291 = scmp.ne.s32.totalorder %s276, %s290
      %p292 = scmp.eq.s32.totalorder %s35, 0
      %p293 = por %p291, %p292
      %s294 = ssub.s32 %s29, %s36
      %p295 = scmp.eq.s32.totalorder %s294, 0
      %s297 = sadd.s32 %s296, 1
      %s298 = scalar_select %p295, %s296, %s297
      %p301 = pneg %p295
      %p302 = scmp.eq.s32.totalorder %s29, 1
      %p303 = por %p301, %p302
      %p304 = scmp.ne.s32.totalorder %s296, %s299
      %p305 = scmp.eq.s32.totalorder %s29, 0
      %p306 = por %p304, %p305
      %p307 = scmp.ne.s32.totalorder %s296, %s299
      %p308 = scmp.eq.s32.totalorder %s34, 1
      %p309 = por %p307, %p308
      %p310 = scmp.ne.s32.totalorder %s299, %s300
      %p311 = scmp.eq.s32.totalorder %s34, 0
      %p312 = por %p310, %p311
      %p313 = scmp.ne.s32.totalorder %s299, %s300
      %p314 = scmp.eq.s32.totalorder %s35, 1
      %p315 = por %p313, %p314
      %p317 = scmp.ne.s32.totalorder %s300, %s316
      %p318 = scmp.eq.s32.totalorder %s35, 0
      %p319 = por %p317, %p318
      %s320 = ssub.s32 %s29, %s36
      %p321 = scmp.eq.s32.totalorder %s320, 0
      %s323 = sadd.s32 %s322, 1
      %s324 = scalar_select %p321, %s322, %s323
      %p327 = pneg %p321
      %p328 = scmp.eq.s32.totalorder %s29, 1
      %p329 = por %p327, %p328
      %p330 = scmp.ne.s32.totalorder %s322, %s325
      %p331 = scmp.eq.s32.totalorder %s29, 0
      %p332 = por %p330, %p331
      %p333 = scmp.ne.s32.totalorder %s322, %s325
      %p334 = scmp.eq.s32.totalorder %s34, 1
      %p335 = por %p333, %p334
      %p336 = scmp.ne.s32.totalorder %s325, %s326
      %p337 = scmp.eq.s32.totalorder %s34, 0
      %p338 = por %p336, %p337
      %p339 = scmp.ne.s32.totalorder %s325, %s326
      %p340 = scmp.eq.s32.totalorder %s35, 1
      %p341 = por %p339, %p340
      %p343 = scmp.ne.s32.totalorder %s326, %s342
      %p344 = scmp.eq.s32.totalorder %s35, 0
      %p345 = por %p343, %p344
      %p346 = scmp.le.s32.totalorder 1, %s29
      %p347 = scmp.lt.s32.totalorder %s29, 3
      %p348 = pnand %p346, %p347
      %p349 = pneg %p348
      // Predicated region
      $region9: #{tpu_custom_call.1} parent=5 // pred_check
        _
      $region10: #{tpu_custom_call.1} parent=5 // pred_check_branch
        %351 = sbr.rel (%p348) target = $region12
      $region11: #{tpu_custom_call.1} parent=5 // pred_region
        %s352 = ssub.s32 %s29, 1
        // Predicated region
        $region13: #{tpu_custom_call.1} parent=11 // pred_check
          %p353 = pneg %p76
        $region14: #{tpu_custom_call.1} parent=11 // pred_check_branch
          %355 = sbr.rel (%p353) target = $region16
        $region15: #{tpu_custom_call.1} parent=11 // pred_region
          _
        $region16: #{tpu_custom_call.1} parent=11 // pred_fallthru
          _
        // Predicated region
        $region17: #{tpu_custom_call.1} parent=11 // pred_check
          %p356 = pneg %p97
        $region18: #{tpu_custom_call.1} parent=11 // pred_check_branch
          %358 = sbr.rel (%p356) target = $region20
        $region19: #{tpu_custom_call.1} parent=11 // pred_region
          _
        $region20: #{tpu_custom_call.1} parent=11 // pred_fallthru
          _
        // Predicated region
        $region21: #{tpu_custom_call.1} parent=11 // pred_check
          %p359 = pneg %p118
        $region22: #{tpu_custom_call.1} parent=11 // pred_check_branch
          %361 = sbr.rel (%p359) target = $region24
        $region23: #{tpu_custom_call.1} parent=11 // pred_region
          _
        $region24: #{tpu_custom_call.1} parent=11 // pred_fallthru
          _
        // Predicated region
        $region25: #{tpu_custom_call.1} parent=11 // pred_check
          %p362 = pneg %p139
        $region26: #{tpu_custom_call.1} parent=11 // pred_check_branch
          %364 = sbr.rel (%p362) target = $region28
        $region27: #{tpu_custom_call.1} parent=11 // pred_region
          _
        $region28: #{tpu_custom_call.1} parent=11 // pred_fallthru
          _
        // Predicated region
        $region29: #{tpu_custom_call.1} parent=11 // pred_check
          %p365 = pneg %p160
        $region30: #{tpu_custom_call.1} parent=11 // pred_check_branch
          %367 = sbr.rel (%p365) target = $region32
        $region31: #{tpu_custom_call.1} parent=11 // pred_region
          %s369 = ssub.s32 16, 16
          %370 = vsyncadd [#allocation4], %s369
          %s372 = sshll.u32 [#allocation3], 4
          %s373 = int_to_ptr.vmem [resolvable:$true] %s372
          %375 = dma.hbm_to_vmem [thread:$0]  %s5, 16, %s373, [#allocation4]
        $region32: #{tpu_custom_call.1} parent=11 // pred_fallthru
          _
        // Predicated region
        $region33: #{tpu_custom_call.1} parent=11 // pred_check
          %p376 = pneg %p181
        $region34: #{tpu_custom_call.1} parent=11 // pred_check_branch
          %378 = sbr.rel (%p376) target = $region36
        $region35: #{tpu_custom_call.1} parent=11 // pred_region
          %s380 = ssub.s32 16, 16
          %381 = vsyncadd [#allocation7], %s380
          %s383 = sshll.u32 [#allocation6], 4
          %s384 = int_to_ptr.vmem [resolvable:$true] %s383
          %386 = dma.hbm_to_vmem [thread:$0]  %s6, 16, %s384, [#allocation7]
        $region36: #{tpu_custom_call.1} parent=11 // pred_fallthru
          _
        // Predicated region
        $region37: #{tpu_custom_call.1} parent=11 // pred_check
          %p387 = pneg %p202
        $region38: #{tpu_custom_call.1} parent=11 // pred_check_branch
          %389 = sbr.rel (%p387) target = $region40
        $region39: #{tpu_custom_call.1} parent=11 // pred_region
          %s391 = ssub.s32 16, 16
          %392 = vsyncadd [#allocation7], %s391
          %s394 = sshll.u32 [#allocation8], 4
          %s395 = int_to_ptr.vmem [resolvable:$true] %s394
          %397 = dma.hbm_to_vmem [thread:$0]  %s7, 16, %s395, [#allocation7]
        $region40: #{tpu_custom_call.1} parent=11 // pred_fallthru
          _
        // Predicated region
        $region41: #{tpu_custom_call.1} parent=11 // pred_check
          %p398 = pneg %p223
        $region42: #{tpu_custom_call.1} parent=11 // pred_check_branch
          %400 = sbr.rel (%p398) target = $region44
        $region43: #{tpu_custom_call.1} parent=11 // pred_region
          _
        $region44: #{tpu_custom_call.1} parent=11 // pred_fallthru
          _
        // Predicated region
        $region45: #{tpu_custom_call.1} parent=11 // pred_check
          %p401 = pneg %p244
        $region46: #{tpu_custom_call.1} parent=11 // pred_check_branch
          %403 = sbr.rel (%p401) target = $region48
        $region47: #{tpu_custom_call.1} parent=11 // pred_region
          %s405 = ssub.s32 16, 16
          %406 = vsyncadd [#allocation10], %s405
          %s408 = sshll.u32 [#allocation9], 4
          %s409 = int_to_ptr.vmem [resolvable:$true] %s408
          %411 = dma.hbm_to_vmem [thread:$0]  %s9, 16, %s409, [#allocation10]
        $region48: #{tpu_custom_call.1} parent=11 // pred_fallthru
          _
        // Predicated region
        $region49: #{tpu_custom_call.1} parent=11 // pred_check
          %p412 = pneg %p265
        $region50: #{tpu_custom_call.1} parent=11 // pred_check_branch
          %414 = sbr.rel (%p412) target = $region52
        $region51: #{tpu_custom_call.1} parent=11 // pred_region
          _
        $region52: #{tpu_custom_call.1} parent=11 // pred_fallthru
          _
        // Predicated region
        $region53: #{tpu_custom_call.1} parent=11 // pred_check
          %p415 = pneg %p286
        $region54: #{tpu_custom_call.1} parent=11 // pred_check_branch
          %417 = sbr.rel (%p415) target = $region56
        $region55: #{tpu_custom_call.1} parent=11 // pred_region
          _
        $region56: #{tpu_custom_call.1} parent=11 // pred_fallthru
          _
      $region12: #{tpu_custom_call.1} parent=5 // pred_fallthru
        _
      %p418 = scmp.lt.s32.totalorder %s29, 2
      // Predicated region
      $region57: #{tpu_custom_call.1} parent=5 // pred_check
        %p419 = pneg %p418
      $region58: #{tpu_custom_call.1} parent=5 // pred_check_branch
        %421 = sbr.rel (%p419) target = $region60
      $region59: #{tpu_custom_call.1} parent=5 // pred_region
        // Predicated region
        $region61: #{tpu_custom_call.1} parent=59 // pred_check
          %p422 = pneg %p49
        $region62: #{tpu_custom_call.1} parent=59 // pred_check_branch
          %424 = sbr.rel (%p422) target = $region64
        $region63: #{tpu_custom_call.1} parent=59 // pred_region
          %p425 = scmp.lt.s32.totalorder %s29, 1
          %s426 = scalar_select %p425, %s29, 1
          %s427 = smul.addr %s426, 2
          %s428 = smul.addr %s427, 8
          %s429 = scalar_lea.vmem %s0, %s428
        $region64: #{tpu_custom_call.1} parent=59 // pred_fallthru
          _
      $region60: #{tpu_custom_call.1} parent=5 // pred_fallthru
        _
      %p430 = scmp.le.s32.totalorder 1, %s29
      %p431 = scmp.lt.s32.totalorder %s29, 3
      %p432 = pnand %p430, %p431
      %p433 = pneg %p432
      // Predicated region
      $region65: #{tpu_custom_call.1} parent=5 // pred_check
        _
      $region66: #{tpu_custom_call.1} parent=5 // pred_check_branch
        %435 = sbr.rel (%p432) target = $region68
      $region67: #{tpu_custom_call.1} parent=5 // pred_region
        %s436 = ssub.s32 %s29, 1
        // Predicated region
        $region69: #{tpu_custom_call.1} parent=67 // pred_check
          %p437 = pneg %p160
        $region70: #{tpu_custom_call.1} parent=67 // pred_check_branch
          %439 = sbr.rel (%p437) target = $region72
        $region71: #{tpu_custom_call.1} parent=67 // pred_region
          %440 = dma.done [#allocation4], 16
        $region72: #{tpu_custom_call.1} parent=67 // pred_fallthru
          _
        // Predicated region
        $region73: #{tpu_custom_call.1} parent=67 // pred_check
          %p441 = pneg %p181
        $region74: #{tpu_custom_call.1} parent=67 // pred_check_branch
          %443 = sbr.rel (%p441) target = $region76
        $region75: #{tpu_custom_call.1} parent=67 // pred_region
          %444 = dma.done [#allocation7], 16
        $region76: #{tpu_custom_call.1} parent=67 // pred_fallthru
          _
        // Predicated region
        $region77: #{tpu_custom_call.1} parent=67 // pred_check
          %p445 = pneg %p202
        $region78: #{tpu_custom_call.1} parent=67 // pred_check_branch
          %447 = sbr.rel (%p445) target = $region80
        $region79: #{tpu_custom_call.1} parent=67 // pred_region
          %448 = dma.done [#allocation7], 16
        $region80: #{tpu_custom_call.1} parent=67 // pred_fallthru
          _
        // Predicated region
        $region81: #{tpu_custom_call.1} parent=67 // pred_check
          %p449 = pneg %p244
        $region82: #{tpu_custom_call.1} parent=67 // pred_check_branch
          %451 = sbr.rel (%p449) target = $region84
        $region83: #{tpu_custom_call.1} parent=67 // pred_region
          %452 = dma.done [#allocation10], 16
        $region84: #{tpu_custom_call.1} parent=67 // pred_fallthru
          _
        %p453 = scmp.lt.s32.totalorder %s34, 1
        %s454 = scalar_select %p453, %s34, 1
        %s455 = smul.addr %s454, 2
        %s456 = smul.addr %s455, 8
        %s457 = scalar_lea.vmem %s0, %s456
        %p458 = pneg %p55
        %p459 = pneg %p52
        %p460 = pneg %p76
        %p461 = pneg %p73
        %p462 = pneg %p97
        %p463 = pneg %p94
        %p464 = pneg %p118
        %p465 = pneg %p115
        %p466 = pneg %p139
        %p467 = pneg %p136
        %p468 = pneg %p160
        %p469 = pneg %p157
        %p470 = pneg %p181
        %p471 = pneg %p178
        %p472 = pneg %p202
        %p473 = pneg %p199
        %p474 = pneg %p223
        %p475 = pneg %p220
        %p476 = pneg %p244
        %p477 = pneg %p241
        %p478 = pneg %p265
        %p479 = pneg %p262
        %p480 = pneg %p286
        %p481 = pneg %p283
        %p482 = pneg %p312
        %p483 = pneg %p309
        %s484 = sand.u32 %s299, 1
        %s485 = scalar_lea.sflag [#allocation5], %s484
        %s486 = sand.u32 %s299, 1
        %s487 = smul.addr %s486, 16
        %s488 = scalar_lea.vmem [#allocation11], %s487
        %p489 = pneg %p338
        %p490 = pneg %p335
        %s491 = sand.u32 %s325, 1
        %s492 = scalar_lea.sflag [#allocation13], %s491
        %s493 = sand.u32 %s325, 1
        %s494 = smul.addr %s493, 64
        %s495 = scalar_lea.vmem [#allocation12], %s494
        %p496 = scmp.lt.s32.totalorder %s34, 1
        %s497 = scalar_select %p496, %s34, 1
        %s498 = smul.addr %s497, 2
        %s499 = smul.addr %s498, 8
        %s500 = scalar_lea.vmem %s0, %s499
        %v502 = vld [vmem:[%s500] sm:$0xff]
        %v503 = vld [vmem:[%s500 + $0x8] sm:$0xff]
        %v504 = vld [vmem:[%s1] sm:$0x1]
        %v505 = vld [vmem:[%s2] sm:$0x1]
        %vm506 = vcmask 261120
        %v507 = vsel %vm506, %v502, 0.0
        %508 = vadd.xlane.f32.xlu0 %v507
        %v509 = vpop.xlane.xlu0 %508
        %v510 = vsel %vm506, %v503, 0.0
        %511 = vadd.xlane.f32.xlu0 %v510
        %v512 = vpop.xlane.xlu0 %511
        %v513 = vrcp.pop 32.0
        %v514 = vmul.f32 %v509, %v513
        %v515 = vmul.f32 %v512, %v513
        %v516 = vsub.f32 %v502, %v514
        %v517 = vsub.f32 %v503, %v515
        %v518 = vmul.f32 %v516, %v516
        %v519 = vmul.f32 %v517, %v517
        %v520 = vsel %vm506, %v518, 0.0
        %521 = vadd.xlane.f32.xlu0 %v520
        %v522 = vpop.xlane.xlu0 %521
        %v523 = vsel %vm506, %v519, 0.0
        %524 = vadd.xlane.f32.xlu0 %v523
        %v525 = vpop.xlane.xlu0 %524
        %v526 = vmul.f32 %v522, %v513
        %v527 = vmul.f32 %v525, %v513
        %v528 = vadd.f32 %v526, 1e-05
        %v529 = vadd.f32 %v527, 1e-05
        %v530 = vrsqrt.pop %v528
        %v531 = vrsqrt.pop %v529
        %v532 = vmul.f32 %v516, %v530
        %v533 = vmul.f32 %v517, %v531
        %v535 = vlaneseq
        %v536 = vshrl.u32 %v535, 7
        %v537 = vsub.s32 0, %v536
        %v538 = vrot.slane %v504, %v537
        %v540 = vmul.f32 %v532, %v538
        %v541 = vmul.f32 %v533, %v538
        %v543 = vlaneseq
        %v544 = vshrl.u32 %v543, 7
        %v545 = vsub.s32 0, %v544
        %v546 = vrot.slane %v505, %v545
        %v548 = vadd.f32 %v540, %v546
        %v549 = vadd.f32 %v541, %v546
        %v550 = vpack.c.bf16 %v549, %v548
        %v551 = vld [vmem:[%s3] sm:$0xf]
        %v552 = vld [vmem:[%s3 + $0x4] sm:$0xf]
        %v553 = vld [vmem:[%s3 + $0x8] sm:$0xf]
        %v554 = vld [vmem:[%s3 + $0xc] sm:$0xf]
        %v559 = vunpack.c.l.b16 %v551
        %v560 = vunpack.c.l.b16 %v552
        %v561 = vunpack.c.l.b16 %v553
        %v562 = vunpack.c.l.b16 %v554
        %v563 = vpack.c.b16 %v560, %v559
        %v564 = vpack.c.b16 %v562, %v561
        %v568 = vsel %vm506, %v550, 0
        %570 = vmatprep.subr.bf16.mxu0 0
        %571 = vmatpush1.bf16.msra.mxu0 0
        %572 = vmatprep.subr.bf16.mxu0 0
        %573 = vmatpush1.bf16.msra.mxu0 0
        %574 = vmatprep.subr.bf16.mxu0 0
        %575 = vmatpush1.bf16.msra.mxu0 0
        %576 = vmatprep.subr.bf16.mxu0 0
        %577 = vmatpush1.bf16.msra.mxu0 0
        %578 = vmatprep.subr.bf16.mxu0 0
        %579 = vmatpush1.bf16.msra.mxu0 0
        %580 = vmatprep.subr.bf16.mxu0 0
        %581 = vmatpush1.bf16.msra.mxu0 0
        %582 = vmatprep.subr.bf16.mxu0 0
        %583 = vmatpush1.bf16.msra.mxu0 %v564
        %584 = vmatprep.subr.bf16.mxu0 0
        %585 = vmatpush1.bf16.msra.mxu0 %v563
        %586 = vmatprep.subr.bf16.mxu0 0
        %587 = vmatpush2.bf16.msra.mxu0 0
        %588 = vmatprep.subr.bf16.mxu0 0
        %589 = vmatpush2.bf16.msra.mxu0 0
        %590 = vmatprep.subr.bf16.mxu0 0
        %591 = vmatpush2.bf16.msra.mxu0 0
        %592 = vmatprep.subr.bf16.mxu0 0
        %593 = vmatpush2.bf16.msra.mxu0 0
        %594 = vmatprep.subr.bf16.mxu0 0
        %595 = vmatpush2.bf16.msra.mxu0 0
        %596 = vmatprep.subr.bf16.mxu0 0
        %597 = vmatpush2.bf16.msra.mxu0 0
        %598 = vmatprep.subr.bf16.mxu0 0
        %599 = vmatpush2.bf16.msra.mxu0 0
        %600 = vmatprep.subr.bf16.mxu0 0
        %601 = vmatpush2.bf16.msra.mxu0 0
        %602 = vmatprep.mubr.bf16.mxu0 0
        %603 = vmatmul.mubr.bf16.gmra.mxu0 %v568
        %v604 = vpop.f32.mrf.mxu0
        %v605 = vadd.f32 0.0, %v604
        %v606 = vpop.f32.mrf.mxu0
        %v607 = vpop.f32.mrf.mxu0
        %v608 = vadd.f32 0.0, %v607
        %v609 = vpop.f32.mrf.mxu0
        %610 = vdwg.mxu0
        %v611 = vmul.f32 %v605, 0.35355338
        %v612 = vmul.f32 %v608, 0.35355338
        %v613 = vpack.c.bf16 %v612, %v611
        %v614 = vpack.c.bf16 %v608, %v605
        %616 = vrot.lane.b32.xlu0 %v614, 96
        %v617 = vpop.permute.xlu0 %616
        %vm618 = vcmask 64512
        %v620 = vsel %vm618, %v613, 0
        %v623 = vsel %vm618, %v617, 0
        %625 = vmatprep.subr.bf16.mxu0 0
        %626 = vmatpush1.bf16.xpose.msra.mxu0 0
        %627 = vmatprep.subr.bf16.mxu0 0
        %628 = vmatpush1.bf16.xpose.msra.mxu0 0
        %629 = vmatprep.subr.bf16.mxu0 0
        %630 = vmatpush1.bf16.xpose.msra.mxu0 0
        %631 = vmatprep.subr.bf16.mxu0 0
        %632 = vmatpush1.bf16.xpose.msra.mxu0 0
        %633 = vmatprep.subr.bf16.mxu0 0
        %634 = vmatpush1.bf16.xpose.msra.mxu0 0
        %635 = vmatprep.subr.bf16.mxu0 0
        %636 = vmatpush1.bf16.xpose.msra.mxu0 0
        %637 = vmatprep.subr.bf16.mxu0 0
        %638 = vmatpush1.bf16.xpose.msra.mxu0 0
        %639 = vmatprep.subr.bf16.mxu0 0
        %640 = vmatpush1.bf16.xpose.msra.mxu0 %v623
        %641 = vmatprep.subr.bf16.mxu0 0
        %642 = vmatpush2.bf16.xpose.msra.mxu0 0
        %643 = vmatprep.subr.bf16.mxu0 0
        %644 = vmatpush2.bf16.xpose.msra.mxu0 0
        %645 = vmatprep.subr.bf16.mxu0 0
        %646 = vmatpush2.bf16.xpose.msra.mxu0 0
        %647 = vmatprep.subr.bf16.mxu0 0
        %648 = vmatpush2.bf16.xpose.msra.mxu0 0
        %649 = vmatprep.subr.bf16.mxu0 0
        %650 = vmatpush2.bf16.xpose.msra.mxu0 0
        %651 = vmatprep.subr.bf16.mxu0 0
        %652 = vmatpush2.bf16.xpose.msra.mxu0 0
        %653 = vmatprep.subr.bf16.mxu0 0
        %654 = vmatpush2.bf16.xpose.msra.mxu0 0
        %655 = vmatprep.subr.bf16.mxu0 0
        %656 = vmatpush2.bf16.xpose.msra.mxu0 0
        %657 = vmatprep.mubr.bf16.mxu0 0
        %658 = vmatmul.mubr.bf16.gmra.mxu0 %v620
        %v659 = vpop.f32.mrf.mxu0
        %v660 = vadd.f32 0.0, %v659
        %v661 = vpop.f32.mrf.mxu0
        %v662 = vpop.f32.mrf.mxu0
        %v663 = vadd.f32 0.0, %v662
        %v664 = vpop.f32.mrf.mxu0
        %665 = vdwg.mxu0
        %vm666 = vcmask 130048
        %v667 = vsel %vm666, %v660, -inf
        %668 = vmax.xlane.f32.xlu0 %v667
        %v669 = vpop.xlane.xlu0 %668
        %v670 = vsel %vm666, %v663, -inf
        %671 = vmax.xlane.f32.xlu0 %v670
        %v672 = vpop.xlane.xlu0 %671
        %v673 = vsub.f32 %v660, %v669
        %v674 = vsub.f32 %v663, %v672
        %v675 = vmul.f32 %v673, 1.442695
        %v676 = vpow.pop %v675
        %v677 = vmul.f32 %v674, 1.442695
        %v678 = vpow.pop %v677
        %v679 = vsel %vm666, %v676, 0.0
        %680 = vadd.xlane.f32.xlu0 %v679
        %v681 = vpop.xlane.xlu0 %680
        %v682 = vsel %vm666, %v678, 0.0
        %683 = vadd.xlane.f32.xlu0 %v682
        %v684 = vpop.xlane.xlu0 %683
        %v685 = vrcp.pop %v681
        %v686 = vrcp.pop %v684
        %v687 = vmul.f32 %v676, %v685
        %v688 = vmul.f32 %v678, %v686
        %689 = vst.msk [vmem:[%s495] sm:$0xff] %vm666, %v687
        %690 = vst.msk [vmem:[%s495 + $0x8] sm:$0xff] %vm666, %v688
        %v691 = vpack.c.bf16 %v688, %v687
        %692 = vrot.lane.b32.xlu0 %v614, 64
        %v693 = vpop.permute.xlu0 %692
        %v696 = vsel %vm666, %v691, 0
        %698 = vmatprep.subr.bf16.mxu0 0
        %699 = vmatpush1.bf16.msra.mxu0 0
        %700 = vmatprep.subr.bf16.mxu0 0
        %701 = vmatpush1.bf16.msra.mxu0 0
        %702 = vmatprep.subr.bf16.mxu0 0
        %703 = vmatpush1.bf16.msra.mxu0 0
        %704 = vmatprep.subr.bf16.mxu0 0
        %705 = vmatpush1.bf16.msra.mxu0 0
        %706 = vmatprep.subr.bf16.mxu0 0
        %707 = vmatpush1.bf16.msra.mxu0 0
        %708 = vmatprep.subr.bf16.mxu0 0
        %709 = vmatpush1.bf16.msra.mxu0 0
        %710 = vmatprep.subr.bf16.mxu0 0
        %711 = vmatpush1.bf16.msra.mxu0 0
        %712 = vmatprep.subr.bf16.mxu0 0
        %713 = vmatpush1.bf16.msra.mxu0 %v693
        %714 = vmatprep.subr.bf16.mxu0 0
        %715 = vmatpush2.bf16.msra.mxu0 0
        %716 = vmatprep.subr.bf16.mxu0 0
        %717 = vmatpush2.bf16.msra.mxu0 0
        %718 = vmatprep.subr.bf16.mxu0 0
        %719 = vmatpush2.bf16.msra.mxu0 0
        %720 = vmatprep.subr.bf16.mxu0 0
        %721 = vmatpush2.bf16.msra.mxu0 0
        %722 = vmatprep.subr.bf16.mxu0 0
        %723 = vmatpush2.bf16.msra.mxu0 0
        %724 = vmatprep.subr.bf16.mxu0 0
        %725 = vmatpush2.bf16.msra.mxu0 0
        %726 = vmatprep.subr.bf16.mxu0 0
        %727 = vmatpush2.bf16.msra.mxu0 0
        %728 = vmatprep.subr.bf16.mxu0 0
        %729 = vmatpush2.bf16.msra.mxu0 0
        %730 = vmatprep.mubr.bf16.mxu0 0
        %731 = vmatmul.mubr.bf16.gmra.mxu0 %v696
        %v732 = vpop.f32.mrf.mxu0
        %v733 = vadd.f32 0.0, %v732
        %v734 = vpop.f32.mrf.mxu0
        %v735 = vpop.f32.mrf.mxu0
        %v736 = vadd.f32 0.0, %v735
        %v737 = vpop.f32.mrf.mxu0
        %738 = vdwg.mxu0
        %739 = vst.msk [vmem:[#allocation2] sm:$0xff] %vm618, %v733
        %740 = vst.msk [vmem:[#allocation2 + $0x8] sm:$0xff] %vm618, %v736
        %742 = vrot.lane.b32.xlu0 %v613, 120
        %v743 = vpop.permute.xlu0 %742
        %744 = vrot.lane.b32.xlu0 %v614, 88
        %v745 = vpop.permute.xlu0 %744
        %v747 = vsel %vm618, %v743, 0
        %v750 = vsel %vm618, %v745, 0
        %752 = vmatprep.subr.bf16.mxu0 0
        %753 = vmatpush1.bf16.xpose.msra.mxu0 0
        %754 = vmatprep.subr.bf16.mxu0 0
        %755 = vmatpush1.bf16.xpose.msra.mxu0 0
        %756 = vmatprep.subr.bf16.mxu0 0
        %757 = vmatpush1.bf16.xpose.msra.mxu0 0
        %758 = vmatprep.subr.bf16.mxu0 0
        %759 = vmatpush1.bf16.xpose.msra.mxu0 0
        %760 = vmatprep.subr.bf16.mxu0 0
        %761 = vmatpush1.bf16.xpose.msra.mxu0 0
        %762 = vmatprep.subr.bf16.mxu0 0
        %763 = vmatpush1.bf16.xpose.msra.mxu0 0
        %764 = vmatprep.subr.bf16.mxu0 0
        %765 = vmatpush1.bf16.xpose.msra.mxu0 0
        %766 = vmatprep.subr.bf16.mxu0 0
        %767 = vmatpush1.bf16.xpose.msra.mxu0 %v750
        %768 = vmatprep.subr.bf16.mxu0 0
        %769 = vmatpush2.bf16.xpose.msra.mxu0 0
        %770 = vmatprep.subr.bf16.mxu0 0
        %771 = vmatpush2.bf16.xpose.msra.mxu0 0
        %772 = vmatprep.subr.bf16.mxu0 0
        %773 = vmatpush2.bf16.xpose.msra.mxu0 0
        %774 = vmatprep.subr.bf16.mxu0 0
        %775 = vmatpush2.bf16.xpose.msra.mxu0 0
        %776 = vmatprep.subr.bf16.mxu0 0
        %777 = vmatpush2.bf16.xpose.msra.mxu0 0
        %778 = vmatprep.subr.bf16.mxu0 0
        %779 = vmatpush2.bf16.xpose.msra.mxu0 0
        %780 = vmatprep.subr.bf16.mxu0 0
        %781 = vmatpush2.bf16.xpose.msra.mxu0 0
        %782 = vmatprep.subr.bf16.mxu0 0
        %783 = vmatpush2.bf16.xpose.msra.mxu0 0
        %784 = vmatprep.mubr.bf16.mxu0 0
        %785 = vmatmul.mubr.bf16.gmra.mxu0 %v747
        %v786 = vpop.f32.mrf.mxu0
        %v787 = vadd.f32 0.0, %v786
        %v788 = vpop.f32.mrf.mxu0
        %v789 = vpop.f32.mrf.mxu0
        %v790 = vadd.f32 0.0, %v789
        %v791 = vpop.f32.mrf.mxu0
        %792 = vdwg.mxu0
        %v793 = vsel %vm666, %v787, -inf
        %794 = vmax.xlane.f32.xlu0 %v793
        %v795 = vpop.xlane.xlu0 %794
        %v796 = vsel %vm666, %v790, -inf
        %797 = vmax.xlane.f32.xlu0 %v796
        %v798 = vpop.xlane.xlu0 %797
        %v799 = vsub.f32 %v787, %v795
        %v800 = vsub.f32 %v790, %v798
        %v801 = vmul.f32 %v799, 1.442695
        %v802 = vpow.pop %v801
        %v803 = vmul.f32 %v800, 1.442695
        %v804 = vpow.pop %v803
        %v805 = vsel %vm666, %v802, 0.0
        %806 = vadd.xlane.f32.xlu0 %v805
        %v807 = vpop.xlane.xlu0 %806
        %v808 = vsel %vm666, %v804, 0.0
        %809 = vadd.xlane.f32.xlu0 %v808
        %v810 = vpop.xlane.xlu0 %809
        %v811 = vrcp.pop %v807
        %v812 = vrcp.pop %v810
        %v813 = vmul.f32 %v802, %v811
        %v814 = vmul.f32 %v804, %v812
        %s815 = scalar_lea.vmem %s495, 16 [#allocation12]
        %816 = vst.msk [vmem:[%s815] sm:$0xff] %vm666, %v813
        %817 = vst.msk [vmem:[%s815 + $0x8] sm:$0xff] %vm666, %v814
        %v818 = vpack.c.bf16 %v814, %v813
        %819 = vrot.lane.b32.xlu0 %v614, 56
        %v820 = vpop.permute.xlu0 %819
        %v823 = vsel %vm666, %v818, 0
        %825 = vmatprep.subr.bf16.mxu0 0
        %826 = vmatpush1.bf16.msra.mxu0 0
        %827 = vmatprep.subr.bf16.mxu0 0
        %828 = vmatpush1.bf16.msra.mxu0 0
        %829 = vmatprep.subr.bf16.mxu0 0
        %830 = vmatpush1.bf16.msra.mxu0 0
        %831 = vmatprep.subr.bf16.mxu0 0
        %832 = vmatpush1.bf16.msra.mxu0 0
        %833 = vmatprep.subr.bf16.mxu0 0
        %834 = vmatpush1.bf16.msra.mxu0 0
        %835 = vmatprep.subr.bf16.mxu0 0
        %836 = vmatpush1.bf16.msra.mxu0 0
        %837 = vmatprep.subr.bf16.mxu0 0
        %838 = vmatpush1.bf16.msra.mxu0 0
        %839 = vmatprep.subr.bf16.mxu0 0
        %840 = vmatpush1.bf16.msra.mxu0 %v820
        %841 = vmatprep.subr.bf16.mxu0 0
        %842 = vmatpush2.bf16.msra.mxu0 0
        %843 = vmatprep.subr.bf16.mxu0 0
        %844 = vmatpush2.bf16.msra.mxu0 0
        %845 = vmatprep.subr.bf16.mxu0 0
        %846 = vmatpush2.bf16.msra.mxu0 0
        %847 = vmatprep.subr.bf16.mxu0 0
        %848 = vmatpush2.bf16.msra.mxu0 0
        %849 = vmatprep.subr.bf16.mxu0 0
        %850 = vmatpush2.bf16.msra.mxu0 0
        %851 = vmatprep.subr.bf16.mxu0 0
        %852 = vmatpush2.bf16.msra.mxu0 0
        %853 = vmatprep.subr.bf16.mxu0 0
        %854 = vmatpush2.bf16.msra.mxu0 0
        %855 = vmatprep.subr.bf16.mxu0 0
        %856 = vmatpush2.bf16.msra.mxu0 0
        %857 = vmatprep.mubr.bf16.mxu0 0
        %858 = vmatmul.mubr.bf16.gmra.mxu0 %v823
        %v859 = vpop.f32.mrf.mxu0
        %v860 = vadd.f32 0.0, %v859
        %v861 = vpop.f32.mrf.mxu0
        %v862 = vpop.f32.mrf.mxu0
        %v863 = vadd.f32 0.0, %v862
        %v864 = vpop.f32.mrf.mxu0
        %865 = vdwg.mxu0
        %868 = vrot.lane.b32.xlu0 %v860, 8
        %v869 = vpop.permute.xlu0 %868
        %870 = vrot.lane.b32.xlu0 %v863, 8
        %v871 = vpop.permute.xlu0 %870
        %vm874 = vcmask 130112
        %875 = vst.msk [vmem:[#allocation2] sm:$0xff] %vm874, %v869
        %876 = vst.msk [vmem:[#allocation2 + $0x8] sm:$0xff] %vm874, %v871
        %877 = vrot.lane.b32.xlu0 %v613, 112
        %v878 = vpop.permute.xlu0 %877
        %879 = vrot.lane.b32.xlu0 %v614, 80
        %v880 = vpop.permute.xlu0 %879
        %v882 = vsel %vm618, %v878, 0
        %v885 = vsel %vm618, %v880, 0
        %887 = vmatprep.subr.bf16.mxu0 0
        %888 = vmatpush1.bf16.xpose.msra.mxu0 0
        %889 = vmatprep.subr.bf16.mxu0 0
        %890 = vmatpush1.bf16.xpose.msra.mxu0 0
        %891 = vmatprep.subr.bf16.mxu0 0
        %892 = vmatpush1.bf16.xpose.msra.mxu0 0
        %893 = vmatprep.subr.bf16.mxu0 0
        %894 = vmatpush1.bf16.xpose.msra.mxu0 0
        %895 = vmatprep.subr.bf16.mxu0 0
        %896 = vmatpush1.bf16.xpose.msra.mxu0 0
        %897 = vmatprep.subr.bf16.mxu0 0
        %898 = vmatpush1.bf16.xpose.msra.mxu0 0
        %899 = vmatprep.subr.bf16.mxu0 0
        %900 = vmatpush1.bf16.xpose.msra.mxu0 0
        %901 = vmatprep.subr.bf16.mxu0 0
        %902 = vmatpush1.bf16.xpose.msra.mxu0 %v885
        %903 = vmatprep.subr.bf16.mxu0 0
        %904 = vmatpush2.bf16.xpose.msra.mxu0 0
        %905 = vmatprep.subr.bf16.mxu0 0
        %906 = vmatpush2.bf16.xpose.msra.mxu0 0
        %907 = vmatprep.subr.bf16.mxu0 0
        %908 = vmatpush2.bf16.xpose.msra.mxu0 0
        %909 = vmatprep.subr.bf16.mxu0 0
        %910 = vmatpush2.bf16.xpose.msra.mxu0 0
        %911 = vmatprep.subr.bf16.mxu0 0
        %912 = vmatpush2.bf16.xpose.msra.mxu0 0
        %913 = vmatprep.subr.bf16.mxu0 0
        %914 = vmatpush2.bf16.xpose.msra.mxu0 0
        %915 = vmatprep.subr.bf16.mxu0 0
        %916 = vmatpush2.bf16.xpose.msra.mxu0 0
        %917 = vmatprep.subr.bf16.mxu0 0
        %918 = vmatpush2.bf16.xpose.msra.mxu0 0
        %919 = vmatprep.mubr.bf16.mxu0 0
        %920 = vmatmul.mubr.bf16.gmra.mxu0 %v882
        %v921 = vpop.f32.mrf.mxu0
        %v922 = vadd.f32 0.0, %v921
        %v923 = vpop.f32.mrf.mxu0
        %v924 = vpop.f32.mrf.mxu0
        %v925 = vadd.f32 0.0, %v924
        %v926 = vpop.f32.mrf.mxu0
        %927 = vdwg.mxu0
        %v928 = vsel %vm666, %v922, -inf
        %929 = vmax.xlane.f32.xlu0 %v928
        %v930 = vpop.xlane.xlu0 %929
        %v931 = vsel %vm666, %v925, -inf
        %932 = vmax.xlane.f32.xlu0 %v931
        %v933 = vpop.xlane.xlu0 %932
        %v934 = vsub.f32 %v922, %v930
        %v935 = vsub.f32 %v925, %v933
        %v936 = vmul.f32 %v934, 1.442695
        %v937 = vpow.pop %v936
        %v938 = vmul.f32 %v935, 1.442695
        %v939 = vpow.pop %v938
        %v940 = vsel %vm666, %v937, 0.0
        %941 = vadd.xlane.f32.xlu0 %v940
        %v942 = vpop.xlane.xlu0 %941
        %v943 = vsel %vm666, %v939, 0.0
        %944 = vadd.xlane.f32.xlu0 %v943
        %v945 = vpop.xlane.xlu0 %944
        %v946 = vrcp.pop %v942
        %v947 = vrcp.pop %v945
        %v948 = vmul.f32 %v937, %v946
        %v949 = vmul.f32 %v939, %v947
        %s950 = scalar_lea.vmem %s495, 32 [#allocation12]
        %951 = vst.msk [vmem:[%s950] sm:$0xff] %vm666, %v948
        %952 = vst.msk [vmem:[%s950 + $0x8] sm:$0xff] %vm666, %v949
        %v953 = vpack.c.bf16 %v949, %v948
        %954 = vrot.lane.b32.xlu0 %v614, 48
        %v955 = vpop.permute.xlu0 %954
        %v958 = vsel %vm666, %v953, 0
        %960 = vmatprep.subr.bf16.mxu0 0
        %961 = vmatpush1.bf16.msra.mxu0 0
        %962 = vmatprep.subr.bf16.mxu0 0
        %963 = vmatpush1.bf16.msra.mxu0 0
        %964 = vmatprep.subr.bf16.mxu0 0
        %965 = vmatpush1.bf16.msra.mxu0 0
        %966 = vmatprep.subr.bf16.mxu0 0
        %967 = vmatpush1.bf16.msra.mxu0 0
        %968 = vmatprep.subr.bf16.mxu0 0
        %969 = vmatpush1.bf16.msra.mxu0 0
        %970 = vmatprep.subr.bf16.mxu0 0
        %971 = vmatpush1.bf16.msra.mxu0 0
        %972 = vmatprep.subr.bf16.mxu0 0
        %973 = vmatpush1.bf16.msra.mxu0 0
        %974 = vmatprep.subr.bf16.mxu0 0
        %975 = vmatpush1.bf16.msra.mxu0 %v955
        %976 = vmatprep.subr.bf16.mxu0 0
        %977 = vmatpush2.bf16.msra.mxu0 0
        %978 = vmatprep.subr.bf16.mxu0 0
        %979 = vmatpush2.bf16.msra.mxu0 0
        %980 = vmatprep.subr.bf16.mxu0 0
        %981 = vmatpush2.bf16.msra.mxu0 0
        %982 = vmatprep.subr.bf16.mxu0 0
        %983 = vmatpush2.bf16.msra.mxu0 0
        %984 = vmatprep.subr.bf16.mxu0 0
        %985 = vmatpush2.bf16.msra.mxu0 0
        %986 = vmatprep.subr.bf16.mxu0 0
        %987 = vmatpush2.bf16.msra.mxu0 0
        %988 = vmatprep.subr.bf16.mxu0 0
        %989 = vmatpush2.bf16.msra.mxu0 0
        %990 = vmatprep.subr.bf16.mxu0 0
        %991 = vmatpush2.bf16.msra.mxu0 0
        %992 = vmatprep.mubr.bf16.mxu0 0
        %993 = vmatmul.mubr.bf16.gmra.mxu0 %v958
        %v994 = vpop.f32.mrf.mxu0
        %v995 = vadd.f32 0.0, %v994
        %v996 = vpop.f32.mrf.mxu0
        %v997 = vpop.f32.mrf.mxu0
        %v998 = vadd.f32 0.0, %v997
        %v999 = vpop.f32.mrf.mxu0
        %1000 = vdwg.mxu0
        %1003 = vrot.lane.b32.xlu0 %v995, 16
        %v1004 = vpop.permute.xlu0 %1003
        %1005 = vrot.lane.b32.xlu0 %v998, 16
        %v1006 = vpop.permute.xlu0 %1005
        %vm1009 = vcmask 195712
        %1010 = vst.msk [vmem:[#allocation2] sm:$0xff] %vm1009, %v1004
        %1011 = vst.msk [vmem:[#allocation2 + $0x8] sm:$0xff] %vm1009, %v1006
        %1012 = vrot.lane.b32.xlu0 %v613, 104
        %v1013 = vpop.permute.xlu0 %1012
        %1014 = vrot.lane.b32.xlu0 %v614, 72
        %v1015 = vpop.permute.xlu0 %1014
        %v1017 = vsel %vm618, %v1013, 0
        %v1020 = vsel %vm618, %v1015, 0
        %1022 = vmatprep.subr.bf16.mxu0 0
        %1023 = vmatpush1.bf16.xpose.msra.mxu0 0
        %1024 = vmatprep.subr.bf16.mxu0 0
        %1025 = vmatpush1.bf16.xpose.msra.mxu0 0
        %1026 = vmatprep.subr.bf16.mxu0 0
        %1027 = vmatpush1.bf16.xpose.msra.mxu0 0
        %1028 = vmatprep.subr.bf16.mxu0 0
        %1029 = vmatpush1.bf16.xpose.msra.mxu0 0
        %1030 = vmatprep.subr.bf16.mxu0 0
        %1031 = vmatpush1.bf16.xpose.msra.mxu0 0
        %1032 = vmatprep.subr.bf16.mxu0 0
        %1033 = vmatpush1.bf16.xpose.msra.mxu0 0
        %1034 = vmatprep.subr.bf16.mxu0 0
        %1035 = vmatpush1.bf16.xpose.msra.mxu0 0
        %1036 = vmatprep.subr.bf16.mxu0 0
        %1037 = vmatpush1.bf16.xpose.msra.mxu0 %v1020
        %1038 = vmatprep.subr.bf16.mxu0 0
        %1039 = vmatpush2.bf16.xpose.msra.mxu0 0
        %1040 = vmatprep.subr.bf16.mxu0 0
        %1041 = vmatpush2.bf16.xpose.msra.mxu0 0
        %1042 = vmatprep.subr.bf16.mxu0 0
        %1043 = vmatpush2.bf16.xpose.msra.mxu0 0
        %1044 = vmatprep.subr.bf16.mxu0 0
        %1045 = vmatpush2.bf16.xpose.msra.mxu0 0
        %1046 = vmatprep.subr.bf16.mxu0 0
        %1047 = vmatpush2.bf16.xpose.msra.mxu0 0
        %1048 = vmatprep.subr.bf16.mxu0 0
        %1049 = vmatpush2.bf16.xpose.msra.mxu0 0
        %1050 = vmatprep.subr.bf16.mxu0 0
        %1051 = vmatpush2.bf16.xpose.msra.mxu0 0
        %1052 = vmatprep.subr.bf16.mxu0 0
        %1053 = vmatpush2.bf16.xpose.msra.mxu0 0
        %1054 = vmatprep.mubr.bf16.mxu0 0
        %1055 = vmatmul.mubr.bf16.gmra.mxu0 %v1017
        %v1056 = vpop.f32.mrf.mxu0
        %v1057 = vadd.f32 0.0, %v1056
        %v1058 = vpop.f32.mrf.mxu0
        %v1059 = vpop.f32.mrf.mxu0
        %v1060 = vadd.f32 0.0, %v1059
        %v1061 = vpop.f32.mrf.mxu0
        %1062 = vdwg.mxu0
        %v1063 = vsel %vm666, %v1057, -inf
        %1064 = vmax.xlane.f32.xlu0 %v1063
        %v1065 = vpop.xlane.xlu0 %1064
        %v1066 = vsel %vm666, %v1060, -inf
        %1067 = vmax.xlane.f32.xlu0 %v1066
        %v1068 = vpop.xlane.xlu0 %1067
        %v1069 = vsub.f32 %v1057, %v1065
        %v1070 = vsub.f32 %v1060, %v1068
        %v1071 = vmul.f32 %v1069, 1.442695
        %v1072 = vpow.pop %v1071
        %v1073 = vmul.f32 %v1070, 1.442695
        %v1074 = vpow.pop %v1073
        %v1075 = vsel %vm666, %v1072, 0.0
        %1076 = vadd.xlane.f32.xlu0 %v1075
        %v1077 = vpop.xlane.xlu0 %1076
        %v1078 = vsel %vm666, %v1074, 0.0
        %1079 = vadd.xlane.f32.xlu0 %v1078
        %v1080 = vpop.xlane.xlu0 %1079
        %v1081 = vrcp.pop %v1077
        %v1082 = vrcp.pop %v1080
        %v1083 = vmul.f32 %v1072, %v1081
        %v1084 = vmul.f32 %v1074, %v1082
        %s1085 = scalar_lea.vmem %s495, 48 [#allocation12]
        %1086 = vst.msk [vmem:[%s1085] sm:$0xff] %vm666, %v1083
        %1087 = vst.msk [vmem:[%s1085 + $0x8] sm:$0xff] %vm666, %v1084
        %v1088 = vpack.c.bf16 %v1084, %v1083
        %1089 = vrot.lane.b32.xlu0 %v614, 40
        %v1090 = vpop.permute.xlu0 %1089
        %v1093 = vsel %vm666, %v1088, 0
        %1095 = vmatprep.subr.bf16.mxu0 0
        %1096 = vmatpush1.bf16.msra.mxu0 0
        %1097 = vmatprep.subr.bf16.mxu0 0
        %1098 = vmatpush1.bf16.msra.mxu0 0
        %1099 = vmatprep.subr.bf16.mxu0 0
        %1100 = vmatpush1.bf16.msra.mxu0 0
        %1101 = vmatprep.subr.bf16.mxu0 0
        %1102 = vmatpush1.bf16.msra.mxu0 0
        %1103 = vmatprep.subr.bf16.mxu0 0
        %1104 = vmatpush1.bf16.msra.mxu0 0
        %1105 = vmatprep.subr.bf16.mxu0 0
        %1106 = vmatpush1.bf16.msra.mxu0 0
        %1107 = vmatprep.subr.bf16.mxu0 0
        %1108 = vmatpush1.bf16.msra.mxu0 0
        %1109 = vmatprep.subr.bf16.mxu0 0
        %1110 = vmatpush1.bf16.msra.mxu0 %v1090
        %1111 = vmatprep.subr.bf16.mxu0 0
        %1112 = vmatpush2.bf16.msra.mxu0 0
        %1113 = vmatprep.subr.bf16.mxu0 0
        %1114 = vmatpush2.bf16.msra.mxu0 0
        %1115 = vmatprep.subr.bf16.mxu0 0
        %1116 = vmatpush2.bf16.msra.mxu0 0
        %1117 = vmatprep.subr.bf16.mxu0 0
        %1118 = vmatpush2.bf16.msra.mxu0 0
        %1119 = vmatprep.subr.bf16.mxu0 0
        %1120 = vmatpush2.bf16.msra.mxu0 0
        %1121 = vmatprep.subr.bf16.mxu0 0
        %1122 = vmatpush2.bf16.msra.mxu0 0
        %1123 = vmatprep.subr.bf16.mxu0 0
        %1124 = vmatpush2.bf16.msra.mxu0 0
        %1125 = vmatprep.subr.bf16.mxu0 0
        %1126 = vmatpush2.bf16.msra.mxu0 0
        %1127 = vmatprep.mubr.bf16.mxu0 0
        %1128 = vmatmul.mubr.bf16.gmra.mxu0 %v1093
        %v1129 = vpop.f32.mrf.mxu0
        %v1130 = vadd.f32 0.0, %v1129
        %v1131 = vpop.f32.mrf.mxu0
        %v1132 = vpop.f32.mrf.mxu0
        %v1133 = vadd.f32 0.0, %v1132
        %v1134 = vpop.f32.mrf.mxu0
        %1135 = vdwg.mxu0
        %1138 = vrot.lane.b32.xlu0 %v1130, 24
        %v1139 = vpop.permute.xlu0 %1138
        %1140 = vrot.lane.b32.xlu0 %v1133, 24
        %v1141 = vpop.permute.xlu0 %1140
        %vm1144 = vcmask 261312
        %1145 = vst.msk [vmem:[#allocation2] sm:$0xff] %vm1144, %v1139
        %1146 = vst.msk [vmem:[#allocation2 + $0x8] sm:$0xff] %vm1144, %v1141
        %v1147 = vld [vmem:[#allocation2] sm:$0xff]
        %v1148 = vld [vmem:[#allocation2 + $0x8] sm:$0xff]
        %v1149 = vpack.c.bf16 %v1148, %v1147
        %v1150 = vld [vmem:[%s4] sm:$0xf]
        %v1151 = vld [vmem:[%s4 + $0x4] sm:$0xf]
        %v1152 = vld [vmem:[%s4 + $0x8] sm:$0xf]
        %v1153 = vld [vmem:[%s4 + $0xc] sm:$0xf]
        %v1154 = vld [vmem:[#allocation3] sm:$0x1]
        %v1156 = vlaneseq
        %v1157 = vshrl.u32 %v1156, 7
        %v1158 = vsub.s32 0, %v1157
        %v1159 = vrot.slane %v1154, %v1158
        %v1165 = vunpack.c.l.b16 %v1150
        %v1166 = vunpack.c.l.b16 %v1151
        %v1167 = vunpack.c.l.b16 %v1152
        %v1168 = vunpack.c.l.b16 %v1153
        %v1169 = vpack.c.b16 %v1166, %v1165
        %v1170 = vpack.c.b16 %v1168, %v1167
        %v1174 = vsel %vm506, %v1149, 0
        %1176 = vmatprep.subr.bf16.mxu0 0
        %1177 = vmatpush1.bf16.msra.mxu0 0
        %1178 = vmatprep.subr.bf16.mxu0 0
        %1179 = vmatpush1.bf16.msra.mxu0 0
        %1180 = vmatprep.subr.bf16.mxu0 0
        %1181 = vmatpush1.bf16.msra.mxu0 0
        %1182 = vmatprep.subr.bf16.mxu0 0
        %1183 = vmatpush1.bf16.msra.mxu0 0
        %1184 = vmatprep.subr.bf16.mxu0 0
        %1185 = vmatpush1.bf16.msra.mxu0 0
        %1186 = vmatprep.subr.bf16.mxu0 0
        %1187 = vmatpush1.bf16.msra.mxu0 0
        %1188 = vmatprep.subr.bf16.mxu0 0
        %1189 = vmatpush1.bf16.msra.mxu0 %v1170
        %1190 = vmatprep.subr.bf16.mxu0 0
        %1191 = vmatpush1.bf16.msra.mxu0 %v1169
        %1192 = vmatprep.subr.bf16.mxu0 0
        %1193 = vmatpush2.bf16.msra.mxu0 0
        %1194 = vmatprep.subr.bf16.mxu0 0
        %1195 = vmatpush2.bf16.msra.mxu0 0
        %1196 = vmatprep.subr.bf16.mxu0 0
        %1197 = vmatpush2.bf16.msra.mxu0 0
        %1198 = vmatprep.subr.bf16.mxu0 0
        %1199 = vmatpush2.bf16.msra.mxu0 0
        %1200 = vmatprep.subr.bf16.mxu0 0
        %1201 = vmatpush2.bf16.msra.mxu0 0
        %1202 = vmatprep.subr.bf16.mxu0 0
        %1203 = vmatpush2.bf16.msra.mxu0 0
        %1204 = vmatprep.subr.bf16.mxu0 0
        %1205 = vmatpush2.bf16.msra.mxu0 0
        %1206 = vmatprep.subr.bf16.mxu0 0
        %1207 = vmatpush2.bf16.msra.mxu0 0
        %1208 = vmatprep.mubr.bf16.mxu0 0
        %1209 = vmatmul.mubr.bf16.gmra.mxu0 %v1174
        %v1210 = vpop.f32.mrf.mxu0
        %v1211 = vadd.f32 %v1159, %v1210
        %v1212 = vpop.f32.mrf.mxu0
        %v1213 = vpop.f32.mrf.mxu0
        %v1214 = vadd.f32 %v1159, %v1213
        %v1215 = vpop.f32.mrf.mxu0
        %1216 = vdwg.mxu0
        %v1217 = vadd.f32 %v502, %v1211
        %v1218 = vadd.f32 %v503, %v1214
        %v1219 = vld [vmem:[#allocation6] sm:$0x1]
        %v1220 = vld [vmem:[#allocation8] sm:$0x1]
        %v1221 = vsel %vm506, %v1217, 0.0
        %1222 = vadd.xlane.f32.xlu0 %v1221
        %v1223 = vpop.xlane.xlu0 %1222
        %v1224 = vsel %vm506, %v1218, 0.0
        %1225 = vadd.xlane.f32.xlu0 %v1224
        %v1226 = vpop.xlane.xlu0 %1225
        %v1227 = vmul.f32 %v1223, %v513
        %v1228 = vmul.f32 %v1226, %v513
        %v1229 = vsub.f32 %v1217, %v1227
        %v1230 = vsub.f32 %v1218, %v1228
        %v1231 = vmul.f32 %v1229, %v1229
        %v1232 = vmul.f32 %v1230, %v1230
        %v1233 = vsel %vm506, %v1231, 0.0
        %1234 = vadd.xlane.f32.xlu0 %v1233
        %v1235 = vpop.xlane.xlu0 %1234
        %v1236 = vsel %vm506, %v1232, 0.0
        %1237 = vadd.xlane.f32.xlu0 %v1236
        %v1238 = vpop.xlane.xlu0 %1237
        %v1239 = vmul.f32 %v1235, %v513
        %v1240 = vmul.f32 %v1238, %v513
        %v1241 = vadd.f32 %v1239, 1e-05
        %v1242 = vadd.f32 %v1240, 1e-05
        %v1243 = vrsqrt.pop %v1241
        %v1244 = vrsqrt.pop %v1242
        %v1245 = vmul.f32 %v1229, %v1243
        %v1246 = vmul.f32 %v1230, %v1244
        %v1248 = vlaneseq
        %v1249 = vshrl.u32 %v1248, 7
        %v1250 = vsub.s32 0, %v1249
        %v1251 = vrot.slane %v1219, %v1250
        %v1253 = vmul.f32 %v1245, %v1251
        %v1254 = vmul.f32 %v1246, %v1251
        %v1256 = vlaneseq
        %v1257 = vshrl.u32 %v1256, 7
        %v1258 = vsub.s32 0, %v1257
        %v1259 = vrot.slane %v1220, %v1258
        %v1261 = vadd.f32 %v1253, %v1259
        %v1262 = vadd.f32 %v1254, %v1259
        %v1263 = vpack.c.bf16 %v1262, %v1261
        %v1264 = vld [vmem:[%s8] sm:$0xf]
        %v1265 = vld [vmem:[%s8 + $0x4] sm:$0xf]
        %v1266 = vld [vmem:[%s8 + $0x8] sm:$0xf]
        %v1267 = vld [vmem:[%s8 + $0xc] sm:$0xf]
        %v1268 = vld [vmem:[#allocation9] sm:$0x1]
        %v1270 = vlaneseq
        %v1271 = vshrl.u32 %v1270, 7
        %v1272 = vsub.s32 0, %v1271
        %v1273 = vrot.slane %v1268, %v1272
        %v1279 = vunpack.c.l.b16 %v1264
        %v1280 = vunpack.c.l.b16 %v1265
        %v1281 = vunpack.c.l.b16 %v1266
        %v1282 = vunpack.c.l.b16 %v1267
        %v1283 = vpack.c.b16 %v1280, %v1279
        %v1284 = vpack.c.b16 %v1282, %v1281
        %v1288 = vsel %vm506, %v1263, 0
        %1290 = vmatprep.subr.bf16.mxu0 0
        %1291 = vmatpush1.bf16.msra.mxu0 0
        %1292 = vmatprep.subr.bf16.mxu0 0
        %1293 = vmatpush1.bf16.msra.mxu0 0
        %1294 = vmatprep.subr.bf16.mxu0 0
        %1295 = vmatpush1.bf16.msra.mxu0 0
        %1296 = vmatprep.subr.bf16.mxu0 0
        %1297 = vmatpush1.bf16.msra.mxu0 0
        %1298 = vmatprep.subr.bf16.mxu0 0
        %1299 = vmatpush1.bf16.msra.mxu0 0
        %1300 = vmatprep.subr.bf16.mxu0 0
        %1301 = vmatpush1.bf16.msra.mxu0 0
        %1302 = vmatprep.subr.bf16.mxu0 0
        %1303 = vmatpush1.bf16.msra.mxu0 %v1284
        %1304 = vmatprep.subr.bf16.mxu0 0
        %1305 = vmatpush1.bf16.msra.mxu0 %v1283
        %1306 = vmatprep.subr.bf16.mxu0 0
        %1307 = vmatpush2.bf16.msra.mxu0 0
        %1308 = vmatprep.subr.bf16.mxu0 0
        %1309 = vmatpush2.bf16.msra.mxu0 0
        %1310 = vmatprep.subr.bf16.mxu0 0
        %1311 = vmatpush2.bf16.msra.mxu0 0
        %1312 = vmatprep.subr.bf16.mxu0 0
        %1313 = vmatpush2.bf16.msra.mxu0 0
        %1314 = vmatprep.subr.bf16.mxu0 0
        %1315 = vmatpush2.bf16.msra.mxu0 0
        %1316 = vmatprep.subr.bf16.mxu0 0
        %1317 = vmatpush2.bf16.msra.mxu0 0
        %1318 = vmatprep.subr.bf16.mxu0 0
        %1319 = vmatpush2.bf16.msra.mxu0 0
        %1320 = vmatprep.subr.bf16.mxu0 0
        %1321 = vmatpush2.bf16.msra.mxu0 0
        %1322 = vmatprep.mubr.bf16.mxu0 0
        %1323 = vmatmul.mubr.bf16.gmra.mxu0 %v1288
        %v1324 = vpop.f32.mrf.mxu0
        %v1325 = vadd.f32 %v1273, %v1324
        %v1326 = vpop.f32.mrf.mxu0
        %v1327 = vpop.f32.mrf.mxu0
        %v1328 = vadd.f32 %v1273, %v1327
        %v1329 = vpop.f32.mrf.mxu0
        %1330 = vdwg.mxu0
        %v1331 = vmul.f32 %v1325, 0.5
        %v1332 = vmul.f32 %v1328, 0.5
        %v1333 = vmul.f32 %v1325, 0.70710677
        %v1334 = vmul.f32 %v1328, 0.70710677
        %v1335 = verf.f32.pop %v1333
        %v1336 = verf.f32.pop %v1334
        %v1337 = vadd.f32 %v1335, 1.0
        %v1338 = vadd.f32 %v1336, 1.0
        %v1339 = vmul.f32 %v1331, %v1337
        %v1340 = vmul.f32 %v1332, %v1338
        %v1341 = vpack.c.bf16 %v1340, %v1339
        %v1342 = vld [vmem:[%s10] sm:$0xf]
        %v1343 = vld [vmem:[%s10 + $0x4] sm:$0xf]
        %v1344 = vld [vmem:[%s10 + $0x8] sm:$0xf]
        %v1345 = vld [vmem:[%s10 + $0xc] sm:$0xf]
        %v1346 = vld [vmem:[%s10 + $0x10] sm:$0xf]
        %v1347 = vld [vmem:[%s10 + $0x14] sm:$0xf]
        %v1348 = vld [vmem:[%s10 + $0x18] sm:$0xf]
        %v1349 = vld [vmem:[%s10 + $0x1c] sm:$0xf]
        %v1350 = vld [vmem:[%s10 + $0x20] sm:$0xf]
        %v1351 = vld [vmem:[%s10 + $0x24] sm:$0xf]
        %v1352 = vld [vmem:[%s10 + $0x28] sm:$0xf]
        %v1353 = vld [vmem:[%s10 + $0x2c] sm:$0xf]
        %v1354 = vld [vmem:[%s10 + $0x30] sm:$0xf]
        %v1355 = vld [vmem:[%s10 + $0x34] sm:$0xf]
        %v1356 = vld [vmem:[%s10 + $0x38] sm:$0xf]
        %v1357 = vld [vmem:[%s10 + $0x3c] sm:$0xf]
        %v1358 = vld [vmem:[%s11] sm:$0x1]
        %v1360 = vlaneseq
        %v1361 = vshrl.u32 %v1360, 7
        %v1362 = vsub.s32 0, %v1361
        %v1363 = vrot.slane %v1358, %v1362
        %v1381 = vunpack.c.l.b16 %v1342
        %v1382 = vunpack.c.l.b16 %v1343
        %v1383 = vunpack.c.l.b16 %v1344
        %v1384 = vunpack.c.l.b16 %v1345
        %v1385 = vunpack.c.l.b16 %v1346
        %v1386 = vunpack.c.l.b16 %v1347
        %v1387 = vunpack.c.l.b16 %v1348
        %v1388 = vunpack.c.l.b16 %v1349
        %v1389 = vunpack.c.l.b16 %v1350
        %v1390 = vunpack.c.l.b16 %v1351
        %v1391 = vunpack.c.l.b16 %v1352
        %v1392 = vunpack.c.l.b16 %v1353
        %v1393 = vunpack.c.l.b16 %v1354
        %v1394 = vunpack.c.l.b16 %v1355
        %v1395 = vunpack.c.l.b16 %v1356
        %v1396 = vunpack.c.l.b16 %v1357
        %v1397 = vpack.c.b16 %v1382, %v1381
        %v1398 = vpack.c.b16 %v1384, %v1383
        %v1399 = vpack.c.b16 %v1386, %v1385
        %v1400 = vpack.c.b16 %v1388, %v1387
        %v1401 = vpack.c.b16 %v1390, %v1389
        %v1402 = vpack.c.b16 %v1392, %v1391
        %v1403 = vpack.c.b16 %v1394, %v1393
        %v1404 = vpack.c.b16 %v1396, %v1395
        %1413 = vmatprep.subr.bf16.mxu0 0
        %1414 = vmatpush1.bf16.msra.mxu0 %v1404
        %1415 = vmatprep.subr.bf16.mxu0 0
        %1416 = vmatpush1.bf16.msra.mxu0 %v1403
        %1417 = vmatprep.subr.bf16.mxu0 0
        %1418 = vmatpush1.bf16.msra.mxu0 %v1402
        %1419 = vmatprep.subr.bf16.mxu0 0
        %1420 = vmatpush1.bf16.msra.mxu0 %v1401
        %1421 = vmatprep.subr.bf16.mxu0 0
        %1422 = vmatpush1.bf16.msra.mxu0 %v1400
        %1423 = vmatprep.subr.bf16.mxu0 0
        %1424 = vmatpush1.bf16.msra.mxu0 %v1399
        %1425 = vmatprep.subr.bf16.mxu0 0
        %1426 = vmatpush1.bf16.msra.mxu0 %v1398
        %1427 = vmatprep.subr.bf16.mxu0 0
        %1428 = vmatpush1.bf16.msra.mxu0 %v1397
        %1429 = vmatprep.subr.bf16.mxu0 0
        %1430 = vmatpush2.bf16.msra.mxu0 0
        %1431 = vmatprep.subr.bf16.mxu0 0
        %1432 = vmatpush2.bf16.msra.mxu0 0
        %1433 = vmatprep.subr.bf16.mxu0 0
        %1434 = vmatpush2.bf16.msra.mxu0 0
        %1435 = vmatprep.subr.bf16.mxu0 0
        %1436 = vmatpush2.bf16.msra.mxu0 0
        %1437 = vmatprep.subr.bf16.mxu0 0
        %1438 = vmatpush2.bf16.msra.mxu0 0
        %1439 = vmatprep.subr.bf16.mxu0 0
        %1440 = vmatpush2.bf16.msra.mxu0 0
        %1441 = vmatprep.subr.bf16.mxu0 0
        %1442 = vmatpush2.bf16.msra.mxu0 0
        %1443 = vmatprep.subr.bf16.mxu0 0
        %1444 = vmatpush2.bf16.msra.mxu0 0
        %1445 = vmatprep.mubr.bf16.mxu0 0
        %1446 = vmatmul.mubr.bf16.gmra.mxu0 %v1341
        %v1447 = vpop.f32.mrf.mxu0
        %v1448 = vadd.f32 %v1363, %v1447
        %v1449 = vpop.f32.mrf.mxu0
        %v1450 = vpop.f32.mrf.mxu0
        %v1451 = vadd.f32 %v1363, %v1450
        %v1452 = vpop.f32.mrf.mxu0
        %1453 = vdwg.mxu0
        %v1454 = vadd.f32 %v1217, %v1448
        %v1455 = vadd.f32 %v1218, %v1451
        %1456 = vst.msk [vmem:[%s488] sm:$0xff] %vm506, %v1454
        %1457 = vst.msk [vmem:[%s488 + $0x8] sm:$0xff] %vm506, %v1455
        %s1458 = sand.u32 %s299, 1
        %s1459 = scalar_lea.sflag [#allocation5], %s1458
        %s1460 = sand.u32 %s299, 1
        %s1461 = smul.addr %s1460, 16
        %s1462 = scalar_lea.vmem [#allocation11], %s1461
        %s1463 = sand.u32 %s325, 1
        %s1464 = scalar_lea.sflag [#allocation13], %s1463
        %s1465 = sand.u32 %s325, 1
        %s1466 = smul.addr %s1465, 64
        %s1467 = scalar_lea.vmem [#allocation12], %s1466
        // Predicated region
        $region85: #{tpu_custom_call.1} parent=67 // pred_check
          %p1468 = pneg %p309
        $region86: #{tpu_custom_call.1} parent=67 // pred_check_branch
          %1470 = sbr.rel (%p1468) target = $region88
        $region87: #{tpu_custom_call.1} parent=67 // pred_region
          %s1472 = ssub.s32 256, 256
          %1473 = vsyncadd %s1459, %s1472
          %s1474 = smul.addr %s34, 2
          %s1475 = smul.addr %s1474, 128
          %s1476 = scalar_lea.hbm %s12, %s1475
          %s1477 = sshll.u32 %s1462, 4
          %s1478 = int_to_ptr.vmem [resolvable:$true] %s1477
          %1483 = dma.vmem_to_hbm [thread:$0]  %s1478, 256, %s1476, %s1459, 128, 128, 8
        $region88: #{tpu_custom_call.1} parent=67 // pred_fallthru
          _
        // Predicated region
        $region89: #{tpu_custom_call.1} parent=67 // pred_check
          %p1484 = pneg %p335
        $region90: #{tpu_custom_call.1} parent=67 // pred_check_branch
          %1486 = sbr.rel (%p1484) target = $region92
        $region91: #{tpu_custom_call.1} parent=67 // pred_region
          %s1488 = ssub.s32 1024, 1024
          %1489 = vsyncadd %s1464, %s1488
          %s1490 = smul.addr %s34, 8
          %s1491 = smul.addr %s1490, 128
          %s1492 = scalar_lea.hbm %s13, %s1491
          %s1493 = sshll.u32 %s1467, 4
          %s1494 = int_to_ptr.vmem [resolvable:$true] %s1493
          %1499 = dma.vmem_to_hbm [thread:$0]  %s1494, 1024, %s1492, %s1464, 128, 128, 8
        $region92: #{tpu_custom_call.1} parent=67 // pred_fallthru
          _
      $region68: #{tpu_custom_call.1} parent=5 // pred_fallthru
        _
      %p1500 = scmp.le.s32.totalorder 2, %s29
      // Predicated region
      $region93: #{tpu_custom_call.1} parent=5 // pred_check
        %p1501 = pneg %p1500
      $region94: #{tpu_custom_call.1} parent=5 // pred_check_branch
        %1503 = sbr.rel (%p1501) target = $region96
      $region95: #{tpu_custom_call.1} parent=5 // pred_region
        %s1504 = ssub.s32 %s29, 2
        // Predicated region
        $region97: #{tpu_custom_call.1} parent=95 // pred_check
          %p1505 = pneg %p315
        $region98: #{tpu_custom_call.1} parent=95 // pred_check_branch
          %1507 = sbr.rel (%p1505) target = $region100
        $region99: #{tpu_custom_call.1} parent=95 // pred_region
          %s1508 = sand.u32 %s300, 1
          %s1509 = scalar_lea.sflag [#allocation5], %s1508
          %s1510 = sand.u32 %s300, 1
          %s1511 = smul.addr %s1510, 16
          %s1512 = scalar_lea.vmem [#allocation11], %s1511
          %1513 = dma.done %s1509, 256
        $region100: #{tpu_custom_call.1} parent=95 // pred_fallthru
          _
        // Predicated region
        $region101: #{tpu_custom_call.1} parent=95 // pred_check
          %p1514 = pneg %p341
        $region102: #{tpu_custom_call.1} parent=95 // pred_check_branch
          %1516 = sbr.rel (%p1514) target = $region104
        $region103: #{tpu_custom_call.1} parent=95 // pred_region
          %s1517 = sand.u32 %s326, 1
          %s1518 = scalar_lea.sflag [#allocation13], %s1517
          %s1519 = sand.u32 %s326, 1
          %s1520 = smul.addr %s1519, 64
          %s1521 = scalar_lea.vmem [#allocation12], %s1520
          %1522 = dma.done %s1518, 1024
        $region104: #{tpu_custom_call.1} parent=95 // pred_fallthru
          _
      $region96: #{tpu_custom_call.1} parent=5 // pred_fallthru
        _
    $region6: #{tpu_custom_call.1} parent=1 // loop_footer
      %s33 = sadd.s32 1, %s29
    $region7: #{tpu_custom_call.1} parent=1 // loop_footer_branch
      %28 = sbr.rel target = $region3
    $region8: #{tpu_custom_call.1} parent=1 // loop_exit
      _
    %1523 = vsyncpa [#allocation4], 1
    %s1524 = scalar_lea.sflag [#allocation4], 1
    %1525 = vsyncpa %s1524, 1
    %1526 = vsyncpa [#allocation7], 1
    %1527 = vsyncpa [#allocation10], 1
    %1528 = vsyncpa [#allocation5], 1
    %s1529 = scalar_lea.sflag [#allocation5], 1
    %1530 = vsyncpa %s1529, 1
    %1531 = vsyncpa [#allocation13], 1
    %s1532 = scalar_lea.sflag [#allocation13], 1
    %1533 = vsyncpa %s1532, 1

</llo_original>
